<compile_context>
chip_gen: v6e
topology: v6e:2x2x1
jax: 0.10.0
libtpu: 0.0.40
codegen_flags: <defaults>
</compile_context>

<pallas_src>
import functools

import jax
import jax.numpy as jnp
import numpy as np
from jax import lax
from jax.experimental import pallas as pl
from jax.experimental.pallas import tpu as pltpu


def _round_up(x, m):
    return (x + m - 1) // m * m


def _tpu_vmem_budget_and_cores():
    """Returns (per-step VMEM byte budget, is_multi_tensorcore_chip)."""
    phys_vmem = 128 * 1024 * 1024
    try:
        info = pltpu.get_tpu_info()
        phys_vmem = int(getattr(info, "vmem_capacity_bytes", phys_vmem))
    except Exception:
        pass
    kind = ""
    try:
        kind = jax.devices()[0].device_kind.lower()
    except Exception:
        pass
    # v7x: 2 TensorCores per chip, 64 MiB VMEM per core -> tighter budget and
    # keep >= 2 grid steps.  v5e/v6e: 1 TC, 128 MiB -> few, large blocks.
    multi_core = ("v7" in kind) or (phys_vmem <= 64 * 1024 * 1024)
    if multi_core:
        budget = (min(phys_vmem, 64 * 1024 * 1024) * 3) // 4       # ~48 MiB
    else:
        budget = (min(phys_vmem, 128 * 1024 * 1024) * 13) // 16    # ~104 MiB
    return int(budget), multi_core


def _temporal_block_kernel(
    x_ref,      # (NB*S, Cin_p)  bf16 — NB causal-padded segments, flattened
    w1_ref,     # (K, Cin_p, Cout_p)  bf16
    b1_ref,     # (1, Cout_p)  f32
    w2_ref,     # (K, Cout_p, Cout_p) bf16
    b2_ref,     # (1, Cout_p)  f32
    *rest,      # [wd_ref (Cin_p,Cout_p) bf16, bd_ref (1,Cout_p) f32,] o_ref, h1_ref
    L: int,
    S: int,
    R: int,
    K: int,
    dilation: int,
    padding: int,
    pad8: int,
    has_downsample: bool,
):
    if has_downsample:
        wd_ref, bd_ref, o_ref, h1_ref = rest
    else:
        o_ref, h1_ref = rest
    cout = o_ref.shape[1]
    rows_blk = o_ref.shape[0]          # NB * S

    # ---- conv1 (causal, dilated) + bias + ReLU: K big MXU matmuls ---------
    # First tap initializes the accumulator (avoids the zeros + extra VALU add
    # per tap; matters on v5e/v6e where MXU results pop through the MRF).
    acc1 = jnp.dot(x_ref[0:R, :], w1_ref[0], preferred_element_type=jnp.float32)
    for k in range(1, K):
        s0 = k * dilation
        acc1 = acc1 + jnp.dot(x_ref[s0:s0 + R, :], w1_ref[k],
                              preferred_element_type=jnp.float32)
    h1 = jnp.maximum(acc1 + b1_ref[...], 0.0)
    # TODO(synk): dropout1 is inference-mode identity (no RNG masking).
    # TODO(synk): for thin-channel layers (Cin << 128) fold the K taps into the
    # contraction (im2col to K*Cin columns padded to 128) so conv1 is a single
    # matmul instead of K mostly-zero-padded ones.

    # Zero rows whose in-segment position >= L: they are garbage conv values
    # that double as the causal zero-pad the *next* segment's conv2 taps read.
    # Invariant: each grid block starts exactly on a segment boundary (block
    # == NB whole segments); the mask below relies on it.
    row = lax.broadcasted_iota(jnp.int32, (R, 1), 0)
    h1 = jnp.where((row % S) < L, h1, 0.0).astype(jnp.bfloat16)

    if pad8 > 0:
        # Zero halo rows [0, pad8) are never overwritten by the per-step h1
        # store, and the scratch persists across grid steps -> write once.
        @pl.when(pl.program_id(0) == 0)
        def _():
            h1_ref[0:pad8, :] = jnp.zeros((pad8, cout), jnp.bfloat16)
    h1_ref[pad8:pad8 + R, :] = h1

    # ---- conv2 (causal, dilated) + bias + ReLU ----------------------------
    s0 = pad8 - padding
    acc2 = jnp.dot(h1_ref[s0:s0 + R, :], w2_ref[0],
                   preferred_element_type=jnp.float32)
    for k in range(1, K):
        s0 = pad8 - padding + k * dilation
        acc2 = acc2 + jnp.dot(h1_ref[s0:s0 + R, :], w2_ref[k],
                              preferred_element_type=jnp.float32)
    h2 = jnp.maximum(acc2 + b2_ref[...], 0.0)
    # TODO(synk): dropout2 is inference-mode identity.

    # ---- residual + final ReLU --------------------------------------------
    if has_downsample:
        res = jnp.dot(x_ref[padding:padding + R, :], wd_ref[...],
                      preferred_element_type=jnp.float32) + bd_ref[...]
    else:
        # Identity residual: add the input rows directly (no eye() matmul).
        res = x_ref[padding:padding + R, :].astype(jnp.float32)
    o_ref[0:R, :] = jnp.maximum(h2 + res, 0.0).astype(o_ref.dtype)
    if pad8 > 0:
        # Deterministic writeback: zero the tail rows of the block instead of
        # DMA-ing uninitialized VMEM back to HBM.
        o_ref[R:rows_blk, :] = jnp.zeros((rows_blk - R, cout), o_ref.dtype)


def temporal_block_pallas(x_ncl, params, *, kernel_size, dilation, padding):
    """x_ncl: (N, Cin, L) float32, PyTorch Conv1d layout. Returns (N, Cout, L) f32."""
    w1, b1, w2, b2, wd, bd = params
    N, Cin, L = x_ncl.shape
    Cout = w1.shape[0]
    K = kernel_size
    # Kernel assumes the standard TCN causal setup (Chomp1d equivalence).
    assert padding == (K - 1) * dilation, "expects padding == (K-1)*dilation"
    has_downsample = wd is not None
    if not has_downsample:
        assert Cin == Cout, "identity residual requires n_inputs == n_outputs"

    # Lane / sublane padding.
    Cin_p = _round_up(max(Cin, 1), 128)
    Cout_p = _round_up(max(Cout, 1), 128)
    pad8 = _round_up(padding, 8)
    L_pad = _round_up(L, 8)
    S = L_pad + pad8                       # per-batch segment length (mult of 8)

    vmem_budget, multi_core = _tpu_vmem_budget_and_cores()

    def step_vmem_bytes(nb):
        rows = nb * S
        x_blk = rows * Cin_p * 2 * 2             # bf16 input block, double-buffered
        o_blk = rows * Cout_p * 2 * 2            # bf16 output block, double-buffered
        h1 = rows * Cout_p * 2                   # bf16 scratch
        accs = 3 * rows * Cout_p * 4             # live f32 acc1/acc2/h2 intermediates
        w_b = (K * Cin_p * Cout_p + K * Cout_p * Cout_p
               + (Cin_p * Cout_p if has_downsample else 0)) * 2   # single-buffered
        b_b = 3 * Cout_p * 4
        return x_blk + o_blk + h1 + accs + w_b + b_b

    # ~1-2k matmul rows per grid step keeps the pipeline near the HBM roofline
    # (per-step overhead ~0.35us); only split into >=2 steps on multi-TC chips.
    rows_target = 2048
    NB = min(N, max(1, rows_target // S))
    if multi_core and N >= 2:
        NB = min(NB, -(-N // 2))           # >= 2 grid steps so both TCs get work
    while NB > 1 and step_vmem_bytes(NB) > vmem_budget:
        NB -= 1
    num_blocks = -(-N // NB)
    N_pad = num_blocks * NB
    R = NB * S - pad8                      # rows computed per grid step (mult of 8)

    # ---- wrapper-side layout glue (NCL -> flattened padded NLC, bf16) -----
    # TODO(synk): for stacked TemporalBlocks keep activations in NLC bf16
    # between blocks and drop this transpose (and the final NLC->NCL + f32
    # cast) — each is a full HBM relayout round trip.
    x_nlc = jnp.transpose(x_ncl, (0, 2, 1)).astype(jnp.bfloat16)
    x_pad = jnp.pad(
        x_nlc,
        ((0, N_pad - N), (padding, S - padding - L), (0, Cin_p - Cin)))
    x_flat = x_pad.reshape(N_pad * S, Cin_p)
    # TODO(synk): for deep-dilation layers (pad8 comparable to L) keep x/out
    # compact at L_pad rows per segment in HBM and synthesize the causal zero
    # halo in VMEM (same trick as the h1 scratch) to cut padded HBM traffic.

    w1_t = jnp.pad(jnp.transpose(w1, (2, 1, 0)),
                   ((0, 0), (0, Cin_p - Cin), (0, Cout_p - Cout))
                   ).astype(jnp.bfloat16)                 # (K, Cin_p, Cout_p)
    w2_t = jnp.pad(jnp.transpose(w2, (2, 1, 0)),
                   ((0, 0), (0, Cout_p - Cout), (0, Cout_p - Cout))
                   ).astype(jnp.bfloat16)                 # (K, Cout_p, Cout_p)
    b1_r = jnp.pad(b1.reshape(1, Cout), ((0, 0), (0, Cout_p - Cout))).astype(jnp.float32)
    b2_r = jnp.pad(b2.reshape(1, Cout), ((0, 0), (0, Cout_p - Cout))).astype(jnp.float32)

    inputs = [x_flat, w1_t, b1_r, w2_t, b2_r]
    if has_downsample:
        wd_t = jnp.pad(jnp.transpose(wd[:, :, 0], (1, 0)),
                       ((0, Cin_p - Cin), (0, Cout_p - Cout))
                       ).astype(jnp.bfloat16)             # (Cin_p, Cout_p)
        bd_r = jnp.pad(bd.reshape(1, Cout), ((0, 0), (0, Cout_p - Cout))).astype(jnp.float32)
        inputs += [wd_t, bd_r]

    kernel = functools.partial(
        _temporal_block_kernel,
        L=L, S=S, R=R, K=K, dilation=dilation, padding=padding, pad8=pad8,
        has_downsample=has_downsample)

    def build_in_specs(single_buffer_weights):
        wkw = dict(pipeline_mode=pl.Buffered(1)) if single_buffer_weights else {}
        specs = [
            pl.BlockSpec((NB * S, Cin_p), lambda i: (i, 0)),
            pl.BlockSpec((K, Cin_p, Cout_p), lambda i: (0, 0, 0), **wkw),
            pl.BlockSpec((1, Cout_p), lambda i: (0, 0), **wkw),
            pl.BlockSpec((K, Cout_p, Cout_p), lambda i: (0, 0, 0), **wkw),
            pl.BlockSpec((1, Cout_p), lambda i: (0, 0), **wkw),
        ]
        if has_downsample:
            specs += [
                pl.BlockSpec((Cin_p, Cout_p), lambda i: (0, 0), **wkw),
                pl.BlockSpec((1, Cout_p), lambda i: (0, 0), **wkw),
            ]
        return specs

    # TODO(synk): for very long sequences on v7x (64 MiB VMEM), add a second
    # grid axis tiling L with a `padding`-row recomputed halo of h1.
    def run(single_buffer_weights):
        return pl.pallas_call(
            kernel,
            out_shape=jax.ShapeDtypeStruct((N_pad * S, Cout_p), jnp.bfloat16),
            grid_spec=pltpu.PrefetchScalarGridSpec(
                num_scalar_prefetch=0,
                grid=(num_blocks,),
                in_specs=build_in_specs(single_buffer_weights),
                out_specs=pl.BlockSpec((NB * S, Cout_p), lambda i: (i, 0)),
                scratch_shapes=[pltpu.VMEM((NB * S, Cout_p), jnp.bfloat16)],
            ),
            compiler_params=pltpu.CompilerParams(
                dimension_semantics=("parallel",),
                vmem_limit_bytes=int(vmem_budget)),
        )(*inputs)

    try:
        # Grid-invariant weights/biases: request single buffering.
        out_flat = run(True)
    except Exception:
        # Fallback if this jax build rejects pipeline_mode=pl.Buffered(1).
        out_flat = run(False)

    out = out_flat.reshape(N_pad, S, Cout_p)[:N, :L, :Cout]
    # Module interface is (N, Cout, L) float32; the kernel's HBM stream stays bf16.
    return jnp.transpose(out, (0, 2, 1)).astype(jnp.float32)


# ----------------------- pure-JAX reference ------------------------------
def _causal_conv1d_ref(x_ncl, w_oik, b, dilation, padding):
    y = lax.conv_general_dilated(
        x_ncl, w_oik, window_strides=(1,), padding=[(padding, padding)],
        rhs_dilation=(dilation,), dimension_numbers=("NCH", "OIH", "NCH"))
    y = y[:, :, :y.shape[2] - padding]                    # Chomp1d
    return y + b[None, :, None]


def temporal_block_ref(x_ncl, params, *, dilation, padding):
    w1, b1, w2, b2, wd, bd = params
    h = jax.nn.relu(_causal_conv1d_ref(x_ncl, w1, b1, dilation, padding))
    h = jax.nn.relu(_causal_conv1d_ref(h, w2, b2, dilation, padding))
    if wd is None:
        res = x_ncl
    else:
        res = lax.conv_general_dilated(
            x_ncl, wd, window_strides=(1,), padding=[(0, 0)],
            dimension_numbers=("NCH", "OIH", "NCH")) + bd[None, :, None]
    return jax.nn.relu(h + res)


if __name__ == "__main__":
    kernel_size, stride, dilation = 3, 1, 1
    padding = (kernel_size - 1) * dilation                # 2, as a TCN block uses
    key = jax.random.PRNGKey(0)

    # Case 1: n_inputs != n_outputs (downsample 1x1 conv on residual).
    N, Cin, Cout, L = 2, 4, 8, 16
    k1, k2, k3, k4, k5, k6, kx = jax.random.split(key, 7)
    w1 = 0.01 * jax.random.normal(k1, (Cout, Cin, kernel_size), jnp.float32)
    w2 = 0.01 * jax.random.normal(k2, (Cout, Cout, kernel_size), jnp.float32)
    wd = 0.01 * jax.random.normal(k3, (Cout, Cin, 1), jnp.float32)
    b1 = 0.05 * jax.random.normal(k4, (Cout,), jnp.float32)
    b2 = 0.05 * jax.random.normal(k5, (Cout,), jnp.float32)
    bd = 0.05 * jax.random.normal(k6, (Cout,), jnp.float32)
    params = (w1, b1, w2, b2, wd, bd)
    x = jax.random.normal(kx, (N, Cin, L), jnp.float32)

    out = temporal_block_pallas(
        x, params, kernel_size=kernel_size, dilation=dilation, padding=padding)
    out = jax.block_until_ready(out)
    ref = temporal_block_ref(x, params, dilation=dilation, padding=padding)
    np.testing.assert_allclose(np.asarray(out), np.asarray(ref),
                               rtol=2e-2, atol=2e-2)
    assert out.shape == (N, Cout, L)

    # Case 2: n_inputs == n_outputs (identity residual, no downsample matmul).
    C2 = 8
    key2 = jax.random.PRNGKey(1)
    j1, j2, j3, j4, jx = jax.random.split(key2, 5)
    w1b = 0.01 * jax.random.normal(j1, (C2, C2, kernel_size), jnp.float32)
    w2b = 0.01 * jax.random.normal(j2, (C2, C2, kernel_size), jnp.float32)
    b1b = 0.05 * jax.random.normal(j3, (C2,), jnp.float32)
    b2b = 0.05 * jax.random.normal(j4, (C2,), jnp.float32)
    params2 = (w1b, b1b, w2b, b2b, None, None)
    x2 = jax.random.normal(jx, (N, C2, L), jnp.float32)

    out2 = temporal_block_pallas(
        x2, params2, kernel_size=kernel_size, dilation=dilation, padding=padding)
    out2 = jax.block_until_ready(out2)
    ref2 = temporal_block_ref(x2, params2, dilation=dilation, padding=padding)
    np.testing.assert_allclose(np.asarray(out2), np.asarray(ref2),
                               rtol=2e-2, atol=8e-2)
    assert out2.shape == (N, C2, L)

    print("KERNEL_OK")
</pallas_src>

<mosaic_0001>
module attributes {stable_mosaic.version = 11 : i64} {
  func.func @_temporal_block_kernel(%arg0: i32, %arg1: memref<48x128xbf16, #tpu.memory_space<vmem>>, %arg2: memref<3x128x128xbf16, #tpu.memory_space<vmem>>, %arg3: memref<1x128xf32, #tpu.memory_space<vmem>>, %arg4: memref<3x128x128xbf16, #tpu.memory_space<vmem>>, %arg5: memref<1x128xf32, #tpu.memory_space<vmem>>, %arg6: memref<128x128xbf16, #tpu.memory_space<vmem>>, %arg7: memref<1x128xf32, #tpu.memory_space<vmem>>, %arg8: memref<48x128xbf16, #tpu.memory_space<vmem>>, %arg9: memref<48x128xbf16, #tpu.memory_space<vmem>>) attributes {dimension_semantics = [#tpu.dimension_semantics<parallel>], iteration_bounds = array<i64: 1>, scalar_prefetch = 0 : i64, scratch_operands = 1 : i64, tpu.core_type = #tpu.core_type<tc>, window_params = [{transform_indices = @transform_0, window_bounds = array<i64: 48, 128>}, {pipeline_mode = #tpu.pipeline_mode<synchronous>, transform_indices = @transform_1, window_bounds = array<i64: 3, 128, 128>}, {pipeline_mode = #tpu.pipeline_mode<synchronous>, transform_indices = @transform_2, window_bounds = array<i64: 1, 128>}, {pipeline_mode = #tpu.pipeline_mode<synchronous>, transform_indices = @transform_3, window_bounds = array<i64: 3, 128, 128>}, {pipeline_mode = #tpu.pipeline_mode<synchronous>, transform_indices = @transform_4, window_bounds = array<i64: 1, 128>}, {pipeline_mode = #tpu.pipeline_mode<synchronous>, transform_indices = @transform_5, window_bounds = array<i64: 128, 128>}, {pipeline_mode = #tpu.pipeline_mode<synchronous>, transform_indices = @transform_6, window_bounds = array<i64: 1, 128>}, {transform_indices = @transform_7, window_bounds = array<i64: 48, 128>}]} {
    %c0 = arith.constant 0 : index
    %c0_0 = arith.constant 0 : index
    %0 = vector.load %arg1[%c0, %c0_0] : memref<48x128xbf16, #tpu.memory_space<vmem>>, vector<40x128xbf16>
    %c0_1 = arith.constant 0 : index
    %c0_2 = arith.constant 0 : index
    %c0_3 = arith.constant 0 : index
    %1 = vector.load %arg2[%c0_1, %c0_2, %c0_3] : memref<3x128x128xbf16, #tpu.memory_space<vmem>>, vector<1x128x128xbf16>
    %2 = vector.shape_cast %1 : vector<1x128x128xbf16> to vector<128x128xbf16>
    %cst = arith.constant dense<0.000000e+00> : vector<40x128xf32>
    %3 = tpu.matmul %0, %2, %cst {dimension_numbers = #tpu.dot_dimension_numbers<[1], [0], [0], [1], [0, 0, 1, 1], [], []>} : vector<40x128xbf16>, vector<128x128xbf16>, vector<40x128xf32> -> vector<40x128xf32>
    %c1 = arith.constant 1 : index
    %c0_4 = arith.constant 0 : index
    %4 = vector.load %arg1[%c1, %c0_4] : memref<48x128xbf16, #tpu.memory_space<vmem>>, vector<40x128xbf16>
    %c1_5 = arith.constant 1 : index
    %c0_6 = arith.constant 0 : index
    %c0_7 = arith.constant 0 : index
    %5 = vector.load %arg2[%c1_5, %c0_6, %c0_7] : memref<3x128x128xbf16, #tpu.memory_space<vmem>>, vector<1x128x128xbf16>
    %6 = vector.shape_cast %5 : vector<1x128x128xbf16> to vector<128x128xbf16>
    %cst_8 = arith.constant dense<0.000000e+00> : vector<40x128xf32>
    %7 = tpu.matmul %4, %6, %cst_8 {dimension_numbers = #tpu.dot_dimension_numbers<[1], [0], [0], [1], [0, 0, 1, 1], [], []>} : vector<40x128xbf16>, vector<128x128xbf16>, vector<40x128xf32> -> vector<40x128xf32>
    %8 = arith.addf %3, %7 : vector<40x128xf32>
    %c2 = arith.constant 2 : index
    %c0_9 = arith.constant 0 : index
    %9 = vector.load %arg1[%c2, %c0_9] : memref<48x128xbf16, #tpu.memory_space<vmem>>, vector<40x128xbf16>
    %c2_10 = arith.constant 2 : index
    %c0_11 = arith.constant 0 : index
    %c0_12 = arith.constant 0 : index
    %10 = vector.load %arg2[%c2_10, %c0_11, %c0_12] : memref<3x128x128xbf16, #tpu.memory_space<vmem>>, vector<1x128x128xbf16>
    %11 = vector.shape_cast %10 : vector<1x128x128xbf16> to vector<128x128xbf16>
    %cst_13 = arith.constant dense<0.000000e+00> : vector<40x128xf32>
    %12 = tpu.matmul %9, %11, %cst_13 {dimension_numbers = #tpu.dot_dimension_numbers<[1], [0], [0], [1], [0, 0, 1, 1], [], []>} : vector<40x128xbf16>, vector<128x128xbf16>, vector<40x128xf32> -> vector<40x128xf32>
    %13 = arith.addf %8, %12 : vector<40x128xf32>
    %c0_14 = arith.constant 0 : index
    %c0_15 = arith.constant 0 : index
    %14 = vector.load %arg3[%c0_14, %c0_15] : memref<1x128xf32, #tpu.memory_space<vmem>>, vector<1x128xf32>
    %15 = vector.broadcast %14 : vector<1x128xf32> to vector<40x128xf32>
    %16 = arith.addf %13, %15 : vector<40x128xf32>
    %cst_16 = arith.constant 0.000000e+00 : f32
    %17 = vector.broadcast %cst_16 : f32 to vector<40x128xf32>
    %18 = arith.maximumf %16, %17 : vector<40x128xf32>
    %19 = tpu.iota {dimensions = array<i32: 0>} : vector<40x1xi32>
    %c24_i32 = arith.constant 24 : i32
    %c0_i32 = arith.constant 0 : i32
    %20 = arith.cmpi eq, %c24_i32, %c0_i32 : i32
    %c1_i32 = arith.constant 1 : i32
    %21 = arith.select %20, %c1_i32, %c24_i32 : i32
    %22 = vector.broadcast %21 : i32 to vector<40x1xi32>
    %23 = arith.remsi %19, %22 : vector<40x1xi32>
    %c0_i32_17 = arith.constant 0 : i32
    %24 = vector.broadcast %c0_i32_17 : i32 to vector<40x1xi32>
    %25 = arith.cmpi ne, %23, %24 : vector<40x1xi32>
    %c0_i32_18 = arith.constant 0 : i32
    %26 = vector.broadcast %c0_i32_18 : i32 to vector<40x1xi32>
    %27 = arith.cmpi slt, %23, %26 : vector<40x1xi32>
    %c0_i32_19 = arith.constant 0 : i32
    %28 = arith.cmpi slt, %21, %c0_i32_19 : i32
    %29 = vector.broadcast %28 : i1 to vector<40x1xi1>
    %30 = vector.broadcast %29 : vector<40x1xi1> to vector<40x1xi1>
    %31 = arith.xori %27, %30 : vector<40x1xi1>
    %32 = arith.andi %31, %25 : vector<40x1xi1>
    %33 = vector.broadcast %21 : i32 to vector<40x1xi32>
    %34 = arith.addi %23, %33 : vector<40x1xi32>
    %35 = arith.select %32, %34, %23 : vector<40x1xi1>, vector<40x1xi32>
    %c16_i32 = arith.constant 16 : i32
    %36 = vector.broadcast %c16_i32 : i32 to vector<40x1xi32>
    %37 = arith.cmpi slt, %35, %36 : vector<40x1xi32>
    %cst_20 = arith.constant 0.000000e+00 : f32
    %38 = vector.shape_cast %37 : vector<40x1xi1> to vector<40x1xi1>
    %39 = vector.broadcast %38 : vector<40x1xi1> to vector<40x128xi1>
    %40 = vector.broadcast %cst_20 : f32 to vector<40x128xf32>
    %41 = arith.select %39, %18, %40 : vector<40x128xi1>, vector<40x128xf32>
    %42 = arith.truncf %41 : vector<40x128xf32> to vector<40x128xbf16>
    %c0_i32_21 = arith.constant 0 : i32
    %43 = arith.cmpi eq, %arg0, %c0_i32_21 : i32
    %44 = arith.extui %43 : i1 to i32
    %c0_i32_22 = arith.constant 0 : i32
    %45 = arith.cmpi ne, %44, %c0_i32_22 : i32
    scf.if %45 {
      %cst_55 = arith.constant 0.000000e+00 : bf16
      %79 = vector.broadcast %cst_55 : bf16 to vector<8x128xbf16>
      %c0_56 = arith.constant 0 : index
      %c0_57 = arith.constant 0 : index
      %80 = vector.load %arg9[%c0_56, %c0_57] : memref<48x128xbf16, #tpu.memory_space<vmem>>, vector<8x128xbf16>
      tpu.vector_store %arg9[%c0_56, %c0_57], %79 {strides = array<i32>} : memref<48x128xbf16, #tpu.memory_space<vmem>>, vector<8x128xbf16>,
    } else {
    }
    %c8 = arith.constant 8 : index
    %c0_23 = arith.constant 0 : index
    %46 = vector.load %arg9[%c8, %c0_23] : memref<48x128xbf16, #tpu.memory_space<vmem>>, vector<40x128xbf16>
    tpu.vector_store %arg9[%c8, %c0_23], %42 {strides = array<i32>} : memref<48x128xbf16, #tpu.memory_space<vmem>>, vector<40x128xbf16>,
    %c6 = arith.constant 6 : index
    %c0_24 = arith.constant 0 : index
    %47 = vector.load %arg9[%c6, %c0_24] : memref<48x128xbf16, #tpu.memory_space<vmem>>, vector<40x128xbf16>
    %c0_25 = arith.constant 0 : index
    %c0_26 = arith.constant 0 : index
    %c0_27 = arith.constant 0 : index
    %48 = vector.load %arg4[%c0_25, %c0_26, %c0_27] : memref<3x128x128xbf16, #tpu.memory_space<vmem>>, vector<1x128x128xbf16>
    %49 = vector.shape_cast %48 : vector<1x128x128xbf16> to vector<128x128xbf16>
    %cst_28 = arith.constant dense<0.000000e+00> : vector<40x128xf32>
    %50 = tpu.matmul %47, %49, %cst_28 {dimension_numbers = #tpu.dot_dimension_numbers<[1], [0], [0], [1], [0, 0, 1, 1], [], []>} : vector<40x128xbf16>, vector<128x128xbf16>, vector<40x128xf32> -> vector<40x128xf32>
    %c7 = arith.constant 7 : index
    %c0_29 = arith.constant 0 : index
    %51 = vector.load %arg9[%c7, %c0_29] : memref<48x128xbf16, #tpu.memory_space<vmem>>, vector<40x128xbf16>
    %c1_30 = arith.constant 1 : index
    %c0_31 = arith.constant 0 : index
    %c0_32 = arith.constant 0 : index
    %52 = vector.load %arg4[%c1_30, %c0_31, %c0_32] : memref<3x128x128xbf16, #tpu.memory_space<vmem>>, vector<1x128x128xbf16>
    %53 = vector.shape_cast %52 : vector<1x128x128xbf16> to vector<128x128xbf16>
    %cst_33 = arith.constant dense<0.000000e+00> : vector<40x128xf32>
    %54 = tpu.matmul %51, %53, %cst_33 {dimension_numbers = #tpu.dot_dimension_numbers<[1], [0], [0], [1], [0, 0, 1, 1], [], []>} : vector<40x128xbf16>, vector<128x128xbf16>, vector<40x128xf32> -> vector<40x128xf32>
    %55 = arith.addf %50, %54 : vector<40x128xf32>
    %c8_34 = arith.constant 8 : index
    %c0_35 = arith.constant 0 : index
    %56 = vector.load %arg9[%c8_34, %c0_35] : memref<48x128xbf16, #tpu.memory_space<vmem>>, vector<40x128xbf16>
    %c2_36 = arith.constant 2 : index
    %c0_37 = arith.constant 0 : index
    %c0_38 = arith.constant 0 : index
    %57 = vector.load %arg4[%c2_36, %c0_37, %c0_38] : memref<3x128x128xbf16, #tpu.memory_space<vmem>>, vector<1x128x128xbf16>
    %58 = vector.shape_cast %57 : vector<1x128x128xbf16> to vector<128x128xbf16>
    %cst_39 = arith.constant dense<0.000000e+00> : vector<40x128xf32>
    %59 = tpu.matmul %56, %58, %cst_39 {dimension_numbers = #tpu.dot_dimension_numbers<[1], [0], [0], [1], [0, 0, 1, 1], [], []>} : vector<40x128xbf16>, vector<128x128xbf16>, vector<40x128xf32> -> vector<40x128xf32>
    %60 = arith.addf %55, %59 : vector<40x128xf32>
    %c0_40 = arith.constant 0 : index
    %c0_41 = arith.constant 0 : index
    %61 = vector.load %arg5[%c0_40, %c0_41] : memref<1x128xf32, #tpu.memory_space<vmem>>, vector<1x128xf32>
    %62 = vector.broadcast %61 : vector<1x128xf32> to vector<40x128xf32>
    %63 = arith.addf %60, %62 : vector<40x128xf32>
    %cst_42 = arith.constant 0.000000e+00 : f32
    %64 = vector.broadcast %cst_42 : f32 to vector<40x128xf32>
    %65 = arith.maximumf %63, %64 : vector<40x128xf32>
    %c2_43 = arith.constant 2 : index
    %c0_44 = arith.constant 0 : index
    %66 = vector.load %arg1[%c2_43, %c0_44] : memref<48x128xbf16, #tpu.memory_space<vmem>>, vector<40x128xbf16>
    %c0_45 = arith.constant 0 : index
    %c0_46 = arith.constant 0 : index
    %67 = vector.load %arg6[%c0_45, %c0_46] : memref<128x128xbf16, #tpu.memory_space<vmem>>, vector<128x128xbf16>
    %cst_47 = arith.constant dense<0.000000e+00> : vector<40x128xf32>
    %68 = tpu.matmul %66, %67, %cst_47 {dimension_numbers = #tpu.dot_dimension_numbers<[1], [0], [0], [1], [0, 0, 1, 1], [], []>} : vector<40x128xbf16>, vector<128x128xbf16>, vector<40x128xf32> -> vector<40x128xf32>
    %c0_48 = arith.constant 0 : index
    %c0_49 = arith.constant 0 : index
    %69 = vector.load %arg7[%c0_48, %c0_49] : memref<1x128xf32, #tpu.memory_space<vmem>>, vector<1x128xf32>
    %70 = vector.broadcast %69 : vector<1x128xf32> to vector<40x128xf32>
    %71 = arith.addf %68, %70 : vector<40x128xf32>
    %72 = arith.addf %65, %71 : vector<40x128xf32>
    %cst_50 = arith.constant 0.000000e+00 : f32
    %73 = vector.broadcast %cst_50 : f32 to vector<40x128xf32>
    %74 = arith.maximumf %72, %73 : vector<40x128xf32>
    %75 = arith.truncf %74 : vector<40x128xf32> to vector<40x128xbf16>
    %c0_51 = arith.constant 0 : index
    %c0_52 = arith.constant 0 : index
    %76 = vector.load %arg8[%c0_51, %c0_52] : memref<48x128xbf16, #tpu.memory_space<vmem>>, vector<40x128xbf16>
    tpu.vector_store %arg8[%c0_51, %c0_52], %75 {strides = array<i32>} : memref<48x128xbf16, #tpu.memory_space<vmem>>, vector<40x128xbf16>,
    %cst_53 = arith.constant 0.000000e+00 : bf16
    %77 = vector.broadcast %cst_53 : bf16 to vector<8x128xbf16>
    %c40 = arith.constant 40 : index
    %c0_54 = arith.constant 0 : index
    %78 = vector.load %arg8[%c40, %c0_54] : memref<48x128xbf16, #tpu.memory_space<vmem>>, vector<8x128xbf16>
    tpu.vector_store %arg8[%c40, %c0_54], %77 {strides = array<i32>} : memref<48x128xbf16, #tpu.memory_space<vmem>>, vector<8x128xbf16>,
    return
  }
  func.func @transform_0(%arg0: i32) -> (i32, i32) {
    %c0_i32 = arith.constant 0 : i32
    %c0_i32_0 = arith.constant 0 : i32
    return %arg0, %c0_i32 : i32, i32
  }
  func.func @transform_1(%arg0: i32) -> (i32, i32, i32) {
    %c0_i32 = arith.constant 0 : i32
    %c0_i32_0 = arith.constant 0 : i32
    %c0_i32_1 = arith.constant 0 : i32
    %c0_i32_2 = arith.constant 0 : i32
    return %c0_i32, %c0_i32_0, %c0_i32_1 : i32, i32, i32
  }
  func.func @transform_2(%arg0: i32) -> (i32, i32) {
    %c0_i32 = arith.constant 0 : i32
    %c0_i32_0 = arith.constant 0 : i32
    %c0_i32_1 = arith.constant 0 : i32
    return %c0_i32, %c0_i32_0 : i32, i32
  }
  func.func @transform_3(%arg0: i32) -> (i32, i32, i32) {
    %c0_i32 = arith.constant 0 : i32
    %c0_i32_0 = arith.constant 0 : i32
    %c0_i32_1 = arith.constant 0 : i32
    %c0_i32_2 = arith.constant 0 : i32
    return %c0_i32, %c0_i32_0, %c0_i32_1 : i32, i32, i32
  }
  func.func @transform_4(%arg0: i32) -> (i32, i32) {
    %c0_i32 = arith.constant 0 : i32
    %c0_i32_0 = arith.constant 0 : i32
    %c0_i32_1 = arith.constant 0 : i32
    return %c0_i32, %c0_i32_0 : i32, i32
  }
  func.func @transform_5(%arg0: i32) -> (i32, i32) {
    %c0_i32 = arith.constant 0 : i32
    %c0_i32_0 = arith.constant 0 : i32
    %c0_i32_1 = arith.constant 0 : i32
    return %c0_i32, %c0_i32_0 : i32, i32
  }
  func.func @transform_6(%arg0: i32) -> (i32, i32) {
    %c0_i32 = arith.constant 0 : i32
    %c0_i32_0 = arith.constant 0 : i32
    %c0_i32_1 = arith.constant 0 : i32
    return %c0_i32, %c0_i32_0 : i32, i32
  }
  func.func @transform_7(%arg0: i32) -> (i32, i32) {
    %c0_i32 = arith.constant 0 : i32
    %c0_i32_0 = arith.constant 0 : i32
    return %arg0, %c0_i32 : i32, i32
  }
}

module attributes {stable_mosaic.version = 11 : i64} {
  func.func @_temporal_block_kernel(%arg0: i32, %arg1: memref<48x128xbf16, #tpu.memory_space<vmem>>, %arg2: memref<3x128x128xbf16, #tpu.memory_space<vmem>>, %arg3: memref<1x128xf32, #tpu.memory_space<vmem>>, %arg4: memref<3x128x128xbf16, #tpu.memory_space<vmem>>, %arg5: memref<1x128xf32, #tpu.memory_space<vmem>>, %arg6: memref<128x128xbf16, #tpu.memory_space<vmem>>, %arg7: memref<1x128xf32, #tpu.memory_space<vmem>>, %arg8: memref<48x128xbf16, #tpu.memory_space<vmem>>, %arg9: memref<48x128xbf16, #tpu.memory_space<vmem>>) attributes {dimension_semantics = [#tpu.dimension_semantics<parallel>], iteration_bounds = array<i64: 1>, scalar_prefetch = 0 : i64, scratch_operands = 1 : i64, tpu.core_type = #tpu.core_type<tc>, window_params = [{transform_indices = @transform_0, window_bounds = array<i64: 48, 128>}, {pipeline_mode = #tpu.pipeline_mode<synchronous>, transform_indices = @transform_1, window_bounds = array<i64: 3, 128, 128>}, {pipeline_mode = #tpu.pipeline_mode<synchronous>, transform_indices = @transform_2, window_bounds = array<i64: 1, 128>}, {pipeline_mode = #tpu.pipeline_mode<synchronous>, transform_indices = @transform_3, window_bounds = array<i64: 3, 128, 128>}, {pipeline_mode = #tpu.pipeline_mode<synchronous>, transform_indices = @transform_4, window_bounds = array<i64: 1, 128>}, {pipeline_mode = #tpu.pipeline_mode<synchronous>, transform_indices = @transform_5, window_bounds = array<i64: 128, 128>}, {pipeline_mode = #tpu.pipeline_mode<synchronous>, transform_indices = @transform_6, window_bounds = array<i64: 1, 128>}, {transform_indices = @transform_7, window_bounds = array<i64: 48, 128>}]} {
    %c0 = arith.constant 0 : index
    %c0_0 = arith.constant 0 : index
    %0 = vector.load %arg1[%c0, %c0_0] : memref<48x128xbf16, #tpu.memory_space<vmem>>, vector<40x128xbf16>
    %c0_1 = arith.constant 0 : index
    %c0_2 = arith.constant 0 : index
    %c0_3 = arith.constant 0 : index
    %1 = vector.load %arg2[%c0_1, %c0_2, %c0_3] : memref<3x128x128xbf16, #tpu.memory_space<vmem>>, vector<1x128x128xbf16>
    %2 = vector.shape_cast %1 : vector<1x128x128xbf16> to vector<128x128xbf16>
    %cst = arith.constant dense<0.000000e+00> : vector<40x128xf32>
    %3 = tpu.matmul %0, %2, %cst {dimension_numbers = #tpu.dot_dimension_numbers<[1], [0], [0], [1], [0, 0, 1, 1], [], []>} : vector<40x128xbf16>, vector<128x128xbf16>, vector<40x128xf32> -> vector<40x128xf32>
    %c1 = arith.constant 1 : index
    %c0_4 = arith.constant 0 : index
    %4 = vector.load %arg1[%c1, %c0_4] : memref<48x128xbf16, #tpu.memory_space<vmem>>, vector<40x128xbf16>
    %c1_5 = arith.constant 1 : index
    %c0_6 = arith.constant 0 : index
    %c0_7 = arith.constant 0 : index
    %5 = vector.load %arg2[%c1_5, %c0_6, %c0_7] : memref<3x128x128xbf16, #tpu.memory_space<vmem>>, vector<1x128x128xbf16>
    %6 = vector.shape_cast %5 : vector<1x128x128xbf16> to vector<128x128xbf16>
    %cst_8 = arith.constant dense<0.000000e+00> : vector<40x128xf32>
    %7 = tpu.matmul %4, %6, %cst_8 {dimension_numbers = #tpu.dot_dimension_numbers<[1], [0], [0], [1], [0, 0, 1, 1], [], []>} : vector<40x128xbf16>, vector<128x128xbf16>, vector<40x128xf32> -> vector<40x128xf32>
    %8 = arith.addf %3, %7 : vector<40x128xf32>
    %c2 = arith.constant 2 : index
    %c0_9 = arith.constant 0 : index
    %9 = vector.load %arg1[%c2, %c0_9] : memref<48x128xbf16, #tpu.memory_space<vmem>>, vector<40x128xbf16>
    %c2_10 = arith.constant 2 : index
    %c0_11 = arith.constant 0 : index
    %c0_12 = arith.constant 0 : index
    %10 = vector.load %arg2[%c2_10, %c0_11, %c0_12] : memref<3x128x128xbf16, #tpu.memory_space<vmem>>, vector<1x128x128xbf16>
    %11 = vector.shape_cast %10 : vector<1x128x128xbf16> to vector<128x128xbf16>
    %cst_13 = arith.constant dense<0.000000e+00> : vector<40x128xf32>
    %12 = tpu.matmul %9, %11, %cst_13 {dimension_numbers = #tpu.dot_dimension_numbers<[1], [0], [0], [1], [0, 0, 1, 1], [], []>} : vector<40x128xbf16>, vector<128x128xbf16>, vector<40x128xf32> -> vector<40x128xf32>
    %13 = arith.addf %8, %12 : vector<40x128xf32>
    %c0_14 = arith.constant 0 : index
    %c0_15 = arith.constant 0 : index
    %14 = vector.load %arg3[%c0_14, %c0_15] : memref<1x128xf32, #tpu.memory_space<vmem>>, vector<1x128xf32>
    %15 = vector.broadcast %14 : vector<1x128xf32> to vector<40x128xf32>
    %16 = arith.addf %13, %15 : vector<40x128xf32>
    %cst_16 = arith.constant 0.000000e+00 : f32
    %17 = vector.broadcast %cst_16 : f32 to vector<40x128xf32>
    %18 = arith.maximumf %16, %17 : vector<40x128xf32>
    %19 = tpu.iota {dimensions = array<i32: 0>} : vector<40x1xi32>
    %c24_i32 = arith.constant 24 : i32
    %c0_i32 = arith.constant 0 : i32
    %20 = arith.cmpi eq, %c24_i32, %c0_i32 : i32
    %c1_i32 = arith.constant 1 : i32
    %21 = arith.select %20, %c1_i32, %c24_i32 : i32
    %22 = vector.broadcast %21 : i32 to vector<40x1xi32>
    %23 = arith.remsi %19, %22 : vector<40x1xi32>
    %c0_i32_17 = arith.constant 0 : i32
    %24 = vector.broadcast %c0_i32_17 : i32 to vector<40x1xi32>
    %25 = arith.cmpi ne, %23, %24 : vector<40x1xi32>
    %c0_i32_18 = arith.constant 0 : i32
    %26 = vector.broadcast %c0_i32_18 : i32 to vector<40x1xi32>
    %27 = arith.cmpi slt, %23, %26 : vector<40x1xi32>
    %c0_i32_19 = arith.constant 0 : i32
    %28 = arith.cmpi slt, %21, %c0_i32_19 : i32
    %29 = vector.broadcast %28 : i1 to vector<40x1xi1>
    %30 = vector.broadcast %29 : vector<40x1xi1> to vector<40x1xi1>
    %31 = arith.xori %27, %30 : vector<40x1xi1>
    %32 = arith.andi %31, %25 : vector<40x1xi1>
    %33 = vector.broadcast %21 : i32 to vector<40x1xi32>
    %34 = arith.addi %23, %33 : vector<40x1xi32>
    %35 = arith.select %32, %34, %23 : vector<40x1xi1>, vector<40x1xi32>
    %c16_i32 = arith.constant 16 : i32
    %36 = vector.broadcast %c16_i32 : i32 to vector<40x1xi32>
    %37 = arith.cmpi slt, %35, %36 : vector<40x1xi32>
    %cst_20 = arith.constant 0.000000e+00 : f32
    %38 = vector.shape_cast %37 : vector<40x1xi1> to vector<40x1xi1>
    %39 = vector.broadcast %38 : vector<40x1xi1> to vector<40x128xi1>
    %40 = vector.broadcast %cst_20 : f32 to vector<40x128xf32>
    %41 = arith.select %39, %18, %40 : vector<40x128xi1>, vector<40x128xf32>
    %42 = arith.truncf %41 : vector<40x128xf32> to vector<40x128xbf16>
    %c0_i32_21 = arith.constant 0 : i32
    %43 = arith.cmpi eq, %arg0, %c0_i32_21 : i32
    %44 = arith.extui %43 : i1 to i32
    %c0_i32_22 = arith.constant 0 : i32
    %45 = arith.cmpi ne, %44, %c0_i32_22 : i32
    scf.if %45 {
      %cst_55 = arith.constant 0.000000e+00 : bf16
      %79 = vector.broadcast %cst_55 : bf16 to vector<8x128xbf16>
      %c0_56 = arith.constant 0 : index
      %c0_57 = arith.constant 0 : index
      %80 = vector.load %arg9[%c0_56, %c0_57] : memref<48x128xbf16, #tpu.memory_space<vmem>>, vector<8x128xbf16>
      tpu.vector_store %arg9[%c0_56, %c0_57], %79 {strides = array<i32>} : memref<48x128xbf16, #tpu.memory_space<vmem>>, vector<8x128xbf16>,
    } else {
    }
    %c8 = arith.constant 8 : index
    %c0_23 = arith.constant 0 : index
    %46 = vector.load %arg9[%c8, %c0_23] : memref<48x128xbf16, #tpu.memory_space<vmem>>, vector<40x128xbf16>
    tpu.vector_store %arg9[%c8, %c0_23], %42 {strides = array<i32>} : memref<48x128xbf16, #tpu.memory_space<vmem>>, vector<40x128xbf16>,
    %c6 = arith.constant 6 : index
    %c0_24 = arith.constant 0 : index
    %47 = vector.load %arg9[%c6, %c0_24] : memref<48x128xbf16, #tpu.memory_space<vmem>>, vector<40x128xbf16>
    %c0_25 = arith.constant 0 : index
    %c0_26 = arith.constant 0 : index
    %c0_27 = arith.constant 0 : index
    %48 = vector.load %arg4[%c0_25, %c0_26, %c0_27] : memref<3x128x128xbf16, #tpu.memory_space<vmem>>, vector<1x128x128xbf16>
    %49 = vector.shape_cast %48 : vector<1x128x128xbf16> to vector<128x128xbf16>
    %cst_28 = arith.constant dense<0.000000e+00> : vector<40x128xf32>
    %50 = tpu.matmul %47, %49, %cst_28 {dimension_numbers = #tpu.dot_dimension_numbers<[1], [0], [0], [1], [0, 0, 1, 1], [], []>} : vector<40x128xbf16>, vector<128x128xbf16>, vector<40x128xf32> -> vector<40x128xf32>
    %c7 = arith.constant 7 : index
    %c0_29 = arith.constant 0 : index
    %51 = vector.load %arg9[%c7, %c0_29] : memref<48x128xbf16, #tpu.memory_space<vmem>>, vector<40x128xbf16>
    %c1_30 = arith.constant 1 : index
    %c0_31 = arith.constant 0 : index
    %c0_32 = arith.constant 0 : index
    %52 = vector.load %arg4[%c1_30, %c0_31, %c0_32] : memref<3x128x128xbf16, #tpu.memory_space<vmem>>, vector<1x128x128xbf16>
    %53 = vector.shape_cast %52 : vector<1x128x128xbf16> to vector<128x128xbf16>
    %cst_33 = arith.constant dense<0.000000e+00> : vector<40x128xf32>
    %54 = tpu.matmul %51, %53, %cst_33 {dimension_numbers = #tpu.dot_dimension_numbers<[1], [0], [0], [1], [0, 0, 1, 1], [], []>} : vector<40x128xbf16>, vector<128x128xbf16>, vector<40x128xf32> -> vector<40x128xf32>
    %55 = arith.addf %50, %54 : vector<40x128xf32>
    %c8_34 = arith.constant 8 : index
    %c0_35 = arith.constant 0 : index
    %56 = vector.load %arg9[%c8_34, %c0_35] : memref<48x128xbf16, #tpu.memory_space<vmem>>, vector<40x128xbf16>
    %c2_36 = arith.constant 2 : index
    %c0_37 = arith.constant 0 : index
    %c0_38 = arith.constant 0 : index
    %57 = vector.load %arg4[%c2_36, %c0_37, %c0_38] : memref<3x128x128xbf16, #tpu.memory_space<vmem>>, vector<1x128x128xbf16>
    %58 = vector.shape_cast %57 : vector<1x128x128xbf16> to vector<128x128xbf16>
    %cst_39 = arith.constant dense<0.000000e+00> : vector<40x128xf32>
    %59 = tpu.matmul %56, %58, %cst_39 {dimension_numbers = #tpu.dot_dimension_numbers<[1], [0], [0], [1], [0, 0, 1, 1], [], []>} : vector<40x128xbf16>, vector<128x128xbf16>, vector<40x128xf32> -> vector<40x128xf32>
    %60 = arith.addf %55, %59 : vector<40x128xf32>
    %c0_40 = arith.constant 0 : index
    %c0_41 = arith.constant 0 : index
    %61 = vector.load %arg5[%c0_40, %c0_41] : memref<1x128xf32, #tpu.memory_space<vmem>>, vector<1x128xf32>
    %62 = vector.broadcast %61 : vector<1x128xf32> to vector<40x128xf32>
    %63 = arith.addf %60, %62 : vector<40x128xf32>
    %cst_42 = arith.constant 0.000000e+00 : f32
    %64 = vector.broadcast %cst_42 : f32 to vector<40x128xf32>
    %65 = arith.maximumf %63, %64 : vector<40x128xf32>
    %c2_43 = arith.constant 2 : index
    %c0_44 = arith.constant 0 : index
    %66 = vector.load %arg1[%c2_43, %c0_44] : memref<48x128xbf16, #tpu.memory_space<vmem>>, vector<40x128xbf16>
    %c0_45 = arith.constant 0 : index
    %c0_46 = arith.constant 0 : index
    %67 = vector.load %arg6[%c0_45, %c0_46] : memref<128x128xbf16, #tpu.memory_space<vmem>>, vector<128x128xbf16>
    %cst_47 = arith.constant dense<0.000000e+00> : vector<40x128xf32>
    %68 = tpu.matmul %66, %67, %cst_47 {dimension_numbers = #tpu.dot_dimension_numbers<[1], [0], [0], [1], [0, 0, 1, 1], [], []>} : vector<40x128xbf16>, vector<128x128xbf16>, vector<40x128xf32> -> vector<40x128xf32>
    %c0_48 = arith.constant 0 : index
    %c0_49 = arith.constant 0 : index
    %69 = vector.load %arg7[%c0_48, %c0_49] : memref<1x128xf32, #tpu.memory_space<vmem>>, vector<1x128xf32>
    %70 = vector.broadcast %69 : vector<1x128xf32> to vector<40x128xf32>
    %71 = arith.addf %68, %70 : vector<40x128xf32>
    %72 = arith.addf %65, %71 : vector<40x128xf32>
    %cst_50 = arith.constant 0.000000e+00 : f32
    %73 = vector.broadcast %cst_50 : f32 to vector<40x128xf32>
    %74 = arith.maximumf %72, %73 : vector<40x128xf32>
    %75 = arith.truncf %74 : vector<40x128xf32> to vector<40x128xbf16>
    %c0_51 = arith.constant 0 : index
    %c0_52 = arith.constant 0 : index
    %76 = vector.load %arg8[%c0_51, %c0_52] : memref<48x128xbf16, #tpu.memory_space<vmem>>, vector<40x128xbf16>
    tpu.vector_store %arg8[%c0_51, %c0_52], %75 {strides = array<i32>} : memref<48x128xbf16, #tpu.memory_space<vmem>>, vector<40x128xbf16>,
    %cst_53 = arith.constant 0.000000e+00 : bf16
    %77 = vector.broadcast %cst_53 : bf16 to vector<8x128xbf16>
    %c40 = arith.constant 40 : index
    %c0_54 = arith.constant 0 : index
    %78 = vector.load %arg8[%c40, %c0_54] : memref<48x128xbf16, #tpu.memory_space<vmem>>, vector<8x128xbf16>
    tpu.vector_store %arg8[%c40, %c0_54], %77 {strides = array<i32>} : memref<48x128xbf16, #tpu.memory_space<vmem>>, vector<8x128xbf16>,
    return
  }
  func.func @transform_0(%arg0: i32) -> (i32, i32) {
    %c0_i32 = arith.constant 0 : i32
    %c0_i32_0 = arith.constant 0 : i32
    return %arg0, %c0_i32 : i32, i32
  }
  func.func @transform_1(%arg0: i32) -> (i32, i32, i32) {
    %c0_i32 = arith.constant 0 : i32
    %c0_i32_0 = arith.constant 0 : i32
    %c0_i32_1 = arith.constant 0 : i32
    %c0_i32_2 = arith.constant 0 : i32
    return %c0_i32, %c0_i32_0, %c0_i32_1 : i32, i32, i32
  }
  func.func @transform_2(%arg0: i32) -> (i32, i32) {
    %c0_i32 = arith.constant 0 : i32
    %c0_i32_0 = arith.constant 0 : i32
    %c0_i32_1 = arith.constant 0 : i32
    return %c0_i32, %c0_i32_0 : i32, i32
  }
  func.func @transform_3(%arg0: i32) -> (i32, i32, i32) {
    %c0_i32 = arith.constant 0 : i32
    %c0_i32_0 = arith.constant 0 : i32
    %c0_i32_1 = arith.constant 0 : i32
    %c0_i32_2 = arith.constant 0 : i32
    return %c0_i32, %c0_i32_0, %c0_i32_1 : i32, i32, i32
  }
  func.func @transform_4(%arg0: i32) -> (i32, i32) {
    %c0_i32 = arith.constant 0 : i32
    %c0_i32_0 = arith.constant 0 : i32
    %c0_i32_1 = arith.constant 0 : i32
    return %c0_i32, %c0_i32_0 : i32, i32
  }
  func.func @transform_5(%arg0: i32) -> (i32, i32) {
    %c0_i32 = arith.constant 0 : i32
    %c0_i32_0 = arith.constant 0 : i32
    %c0_i32_1 = arith.constant 0 : i32
    return %c0_i32, %c0_i32_0 : i32, i32
  }
  func.func @transform_6(%arg0: i32) -> (i32, i32) {
    %c0_i32 = arith.constant 0 : i32
    %c0_i32_0 = arith.constant 0 : i32
    %c0_i32_1 = arith.constant 0 : i32
    return %c0_i32, %c0_i32_0 : i32, i32
  }
  func.func @transform_7(%arg0: i32) -> (i32, i32) {
    %c0_i32 = arith.constant 0 : i32
    %c0_i32_0 = arith.constant 0 : i32
    return %arg0, %c0_i32 : i32, i32
  }
}

</mosaic_0001>

<llo_original>
// kernel: tpu_custom_call.1
$region0: #{tpu_custom_call.1}
  #allocation0 [shape = 'u32[]', space=smem, size = 0x4, offset = 0x4, fixed_abs, tag = 'smem constant byte address 0x4 - core index']
  #allocation1 [shape = 'u32[144,128]{1,0:T(1,128)}', space=vmem, size = 0x12000, scoped, tag = 'internal scratch']
  #allocation2 [shape = 'bf16[48,128]{1,0:T(8,128)(2,1)}', space=vmem, size = 0x3000, scoped, tag = 'scratch operand']
  %s0 = inlined_call_operand.hbm [shape: bf16[48,128], index: 0, kind: input, shape index: {}]
  %s1 = inlined_call_operand.hbm [shape: bf16[3,128,128], index: 1, kind: input, shape index: {}]
  %s2 = inlined_call_operand.vmem [shape: f32[1,128], index: 2, kind: input, shape index: {}]
  %s3 = inlined_call_operand.hbm [shape: bf16[3,128,128], index: 3, kind: input, shape index: {}]
  %s4 = inlined_call_operand.vmem [shape: f32[1,128], index: 4, kind: input, shape index: {}]
  %s5 = inlined_call_operand.hbm [shape: bf16[128,128], index: 5, kind: input, shape index: {}]
  %s6 = inlined_call_operand.vmem [shape: f32[1,128], index: 6, kind: input, shape index: {}]
  %s7 = inlined_call_operand.hbm [shape: bf16[48,128], index: 7, kind: output, shape index: {}]
  %s8 = sld [smem:[#allocation0]]
  $region58: #{tpu_custom_call.1} parent=0
    _
  %s10 = ssub.s32 1, %s8
  %s11 = scalar_select 0, %s10, %s8
  $region1: #{tpu_custom_call.1} parent=0
    #allocation3 [shape = 'u8[12288]{0}', space=vmem, size = 0x3000, scoped, tag = 'input window, operand 0, single buffered']
    #allocation4 [shape = 's32[1]{0}', space=sflag, size = 0x4, scoped, tag = 'scoped memory for tpu_custom_call.1']
    #allocation5 [shape = 's32[1]{0}', space=sflag, size = 0x4, scoped, tag = 'scoped memory for tpu_custom_call.1']
    #allocation6 [shape = 'u8[98304]{0}', space=vmem, size = 0x18000, scoped, tag = 'input window, operand 1, single buffered']
    #allocation7 [shape = 's32[1]{0}', space=sflag, size = 0x4, scoped, tag = 'scoped memory for tpu_custom_call.1']
    #allocation8 [shape = 'u8[98304]{0}', space=vmem, size = 0x18000, scoped, tag = 'input window, operand 3, single buffered']
    #allocation9 [shape = 'u8[32768]{0}', space=vmem, size = 0x8000, scoped, tag = 'input window, operand 5, single buffered']
    #allocation10 [shape = 's32[1]{0}', space=sflag, size = 0x4, scoped, tag = 'scoped memory for tpu_custom_call.1']
    #allocation11 [shape = 'u8[12288]{0}', space=vmem, size = 0x3000, scoped, tag = 'output window, operand 0, single buffered']
    %12 = vsyncpa [#allocation4], 0
    %13 = vsyncpa [#allocation7], 0
    %14 = vsyncpa [#allocation10], 0
    %15 = vsyncpa [#allocation5], 0
    // Predicated region
    $region2: #{tpu_custom_call.1} parent=1 // pred_check
      _
    $region3: #{tpu_custom_call.1} parent=1 // pred_check_branch
      %17 = sbr.rel (0) target = $region5
    $region4: #{tpu_custom_call.1} parent=1 // pred_region
      %s19 = ssub.s32 384, 384
      %20 = vsyncadd [#allocation4], %s19
      %s21 = sshll.u32 [#allocation3], 4
      %s22 = int_to_ptr.vmem [resolvable:$true] %s21
      %27 = dma.hbm_to_vmem [thread:$0]  %s0, 384, %s22, [#allocation4], 64, 64, 4
    $region5: #{tpu_custom_call.1} parent=1 // pred_fallthru
      _
    // Predicated region
    $region6: #{tpu_custom_call.1} parent=1 // pred_check
      _
    $region7: #{tpu_custom_call.1} parent=1 // pred_check_branch
      %29 = sbr.rel (0) target = $region9
    $region8: #{tpu_custom_call.1} parent=1 // pred_region
      %s31 = ssub.s32 3072, 3072
      %32 = vsyncadd [#allocation7], %s31
      %s33 = sshll.u32 [#allocation6], 4
      %s34 = int_to_ptr.vmem [resolvable:$true] %s33
      %39 = dma.hbm_to_vmem [thread:$0]  %s1, 3072, %s34, [#allocation7], 64, 64, 4
    $region9: #{tpu_custom_call.1} parent=1 // pred_fallthru
      _
    // Predicated region
    $region10: #{tpu_custom_call.1} parent=1 // pred_check
      _
    $region11: #{tpu_custom_call.1} parent=1 // pred_check_branch
      %41 = sbr.rel (0) target = $region13
    $region12: #{tpu_custom_call.1} parent=1 // pred_region
      _
    $region13: #{tpu_custom_call.1} parent=1 // pred_fallthru
      _
    // Predicated region
    $region14: #{tpu_custom_call.1} parent=1 // pred_check
      _
    $region15: #{tpu_custom_call.1} parent=1 // pred_check_branch
      %43 = sbr.rel (0) target = $region17
    $region16: #{tpu_custom_call.1} parent=1 // pred_region
      %s45 = ssub.s32 3072, 3072
      %46 = vsyncadd [#allocation7], %s45
      %s47 = sshll.u32 [#allocation8], 4
      %s48 = int_to_ptr.vmem [resolvable:$true] %s47
      %53 = dma.hbm_to_vmem [thread:$0]  %s3, 3072, %s48, [#allocation7], 64, 64, 4
    $region17: #{tpu_custom_call.1} parent=1 // pred_fallthru
      _
    // Predicated region
    $region18: #{tpu_custom_call.1} parent=1 // pred_check
      _
    $region19: #{tpu_custom_call.1} parent=1 // pred_check_branch
      %55 = sbr.rel (0) target = $region21
    $region20: #{tpu_custom_call.1} parent=1 // pred_region
      _
    $region21: #{tpu_custom_call.1} parent=1 // pred_fallthru
      _
    // Predicated region
    $region22: #{tpu_custom_call.1} parent=1 // pred_check
      _
    $region23: #{tpu_custom_call.1} parent=1 // pred_check_branch
      %57 = sbr.rel (0) target = $region25
    $region24: #{tpu_custom_call.1} parent=1 // pred_region
      %s59 = ssub.s32 1024, 1024
      %60 = vsyncadd [#allocation10], %s59
      %s61 = sshll.u32 [#allocation9], 4
      %s62 = int_to_ptr.vmem [resolvable:$true] %s61
      %67 = dma.hbm_to_vmem [thread:$0]  %s5, 1024, %s62, [#allocation10], 64, 64, 4
    $region25: #{tpu_custom_call.1} parent=1 // pred_fallthru
      _
    // Predicated region
    $region26: #{tpu_custom_call.1} parent=1 // pred_check
      _
    $region27: #{tpu_custom_call.1} parent=1 // pred_check_branch
      %69 = sbr.rel (0) target = $region29
    $region28: #{tpu_custom_call.1} parent=1 // pred_region
      _
    $region29: #{tpu_custom_call.1} parent=1 // pred_fallthru
      _
    // Predicated region
    $region30: #{tpu_custom_call.1} parent=1 // pred_check
      _
    $region31: #{tpu_custom_call.1} parent=1 // pred_check_branch
      %71 = sbr.rel (0) target = $region33
    $region32: #{tpu_custom_call.1} parent=1 // pred_region
      %72 = dma.done [#allocation4], 384
    $region33: #{tpu_custom_call.1} parent=1 // pred_fallthru
      _
    // Predicated region
    $region34: #{tpu_custom_call.1} parent=1 // pred_check
      _
    $region35: #{tpu_custom_call.1} parent=1 // pred_check_branch
      %74 = sbr.rel (0) target = $region37
    $region36: #{tpu_custom_call.1} parent=1 // pred_region
      %75 = dma.done [#allocation7], 3072
    $region37: #{tpu_custom_call.1} parent=1 // pred_fallthru
      _
    // Predicated region
    $region38: #{tpu_custom_call.1} parent=1 // pred_check
      _
    $region39: #{tpu_custom_call.1} parent=1 // pred_check_branch
      %77 = sbr.rel (0) target = $region41
    $region40: #{tpu_custom_call.1} parent=1 // pred_region
      %78 = dma.done [#allocation7], 3072
    $region41: #{tpu_custom_call.1} parent=1 // pred_fallthru
      _
    // Predicated region
    $region42: #{tpu_custom_call.1} parent=1 // pred_check
      _
    $region43: #{tpu_custom_call.1} parent=1 // pred_check_branch
      %80 = sbr.rel (0) target = $region45
    $region44: #{tpu_custom_call.1} parent=1 // pred_region
      %81 = dma.done [#allocation10], 1024
    $region45: #{tpu_custom_call.1} parent=1 // pred_fallthru
      _
    %v83 = vld [vmem:[#allocation3] sm:$0xf]
    %v84 = vld [vmem:[#allocation3 + $0x4] sm:$0xf]
    %v85 = vld [vmem:[#allocation3 + $0x8] sm:$0xf]
    %v86 = vld [vmem:[#allocation3 + $0xc] sm:$0xf]
    %v87 = vld [vmem:[#allocation3 + $0x10] sm:$0xf]
    %v88 = vld [vmem:[#allocation6] sm:$0xf]
    %v89 = vld [vmem:[#allocation6 + $0x4] sm:$0xf]
    %v90 = vld [vmem:[#allocation6 + $0x8] sm:$0xf]
    %v91 = vld [vmem:[#allocation6 + $0xc] sm:$0xf]
    %v92 = vld [vmem:[#allocation6 + $0x10] sm:$0xf]
    %v93 = vld [vmem:[#allocation6 + $0x14] sm:$0xf]
    %v94 = vld [vmem:[#allocation6 + $0x18] sm:$0xf]
    %v95 = vld [vmem:[#allocation6 + $0x1c] sm:$0xf]
    %v96 = vld [vmem:[#allocation6 + $0x20] sm:$0xf]
    %v97 = vld [vmem:[#allocation6 + $0x24] sm:$0xf]
    %v98 = vld [vmem:[#allocation6 + $0x28] sm:$0xf]
    %v99 = vld [vmem:[#allocation6 + $0x2c] sm:$0xf]
    %v100 = vld [vmem:[#allocation6 + $0x30] sm:$0xf]
    %v101 = vld [vmem:[#allocation6 + $0x34] sm:$0xf]
    %v102 = vld [vmem:[#allocation6 + $0x38] sm:$0xf]
    %v103 = vld [vmem:[#allocation6 + $0x3c] sm:$0xf]
    %v104 = vld [vmem:[#allocation3] sm:$0xf]
    %v105 = vld [vmem:[#allocation3 + $0x4] sm:$0xf]
    %v106 = vld [vmem:[#allocation3 + $0x8] sm:$0xf]
    %v107 = vld [vmem:[#allocation3 + $0xc] sm:$0xf]
    %v108 = vld [vmem:[#allocation3 + $0x10] sm:$0xf]
    %v109 = vld [vmem:[#allocation3 + $0x14] sm:$0x1]
    %s110 = scalar_lea.vmem [#allocation6], 64
    %v111 = vld [vmem:[%s110] sm:$0xf]
    %v112 = vld [vmem:[%s110 + $0x4] sm:$0xf]
    %v113 = vld [vmem:[%s110 + $0x8] sm:$0xf]
    %v114 = vld [vmem:[%s110 + $0xc] sm:$0xf]
    %v115 = vld [vmem:[%s110 + $0x10] sm:$0xf]
    %v116 = vld [vmem:[%s110 + $0x14] sm:$0xf]
    %v117 = vld [vmem:[%s110 + $0x18] sm:$0xf]
    %v118 = vld [vmem:[%s110 + $0x1c] sm:$0xf]
    %v119 = vld [vmem:[%s110 + $0x20] sm:$0xf]
    %v120 = vld [vmem:[%s110 + $0x24] sm:$0xf]
    %v121 = vld [vmem:[%s110 + $0x28] sm:$0xf]
    %v122 = vld [vmem:[%s110 + $0x2c] sm:$0xf]
    %v123 = vld [vmem:[%s110 + $0x30] sm:$0xf]
    %v124 = vld [vmem:[%s110 + $0x34] sm:$0xf]
    %v125 = vld [vmem:[%s110 + $0x38] sm:$0xf]
    %v126 = vld [vmem:[%s110 + $0x3c] sm:$0xf]
    %v133 = vunpack.c.l.b16 %v104
    %v134 = vunpack.c.l.b16 %v105
    %v135 = vunpack.c.l.b16 %v106
    %v136 = vunpack.c.l.b16 %v107
    %v137 = vunpack.c.l.b16 %v108
    %v138 = vunpack.c.l.b16 %v109
    %v139 = vpack.c.b16 %v134, %v133
    %v140 = vpack.c.b16 %v136, %v135
    %v141 = vpack.c.b16 %v138, %v137
    %vm142 = vsmask.f32 7424
    %v144 = vshrl.u32 %v139, 16
    %v146 = vshll.u32 %v139, 16
    %v148 = vrot.slane %v146, 1
    %v149 = vor.u32 %v144, %v148
    %v151 = vshll.u32 %v140, 16
    %v153 = vrot.slane %v151, 1
    %v154 = vsel %vm142, %v149, %v153
    %v155 = vshrl.u32 %v140, 16
    %v157 = vor.u32 %v155, %v153
    %v159 = vshll.u32 %v141, 16
    %v161 = vrot.slane %v159, 1
    %v162 = vsel %vm142, %v157, %v161
    %v163 = vshrl.u32 %v141, 16
    %v165 = vor.u32 %v163, %v161
    %v185 = vunpack.c.l.b16 %v111
    %v186 = vunpack.c.l.b16 %v112
    %v187 = vunpack.c.l.b16 %v113
    %v188 = vunpack.c.l.b16 %v114
    %v189 = vunpack.c.l.b16 %v115
    %v190 = vunpack.c.l.b16 %v116
    %v191 = vunpack.c.l.b16 %v117
    %v192 = vunpack.c.l.b16 %v118
    %v193 = vunpack.c.l.b16 %v119
    %v194 = vunpack.c.l.b16 %v120
    %v195 = vunpack.c.l.b16 %v121
    %v196 = vunpack.c.l.b16 %v122
    %v197 = vunpack.c.l.b16 %v123
    %v198 = vunpack.c.l.b16 %v124
    %v199 = vunpack.c.l.b16 %v125
    %v200 = vunpack.c.l.b16 %v126
    %v201 = vpack.c.b16 %v186, %v185
    %v202 = vpack.c.b16 %v188, %v187
    %v203 = vpack.c.b16 %v190, %v189
    %v204 = vpack.c.b16 %v192, %v191
    %v205 = vpack.c.b16 %v194, %v193
    %v206 = vpack.c.b16 %v196, %v195
    %v207 = vpack.c.b16 %v198, %v197
    %v208 = vpack.c.b16 %v200, %v199
    %217 = vmatprep.subr.bf16.mxu0 0
    %218 = vmatpush1.bf16.msra.mxu0 %v208
    %219 = vmatprep.subr.bf16.mxu0 0
    %220 = vmatpush1.bf16.msra.mxu0 %v207
    %221 = vmatprep.subr.bf16.mxu0 0
    %222 = vmatpush1.bf16.msra.mxu0 %v206
    %223 = vmatprep.subr.bf16.mxu0 0
    %224 = vmatpush1.bf16.msra.mxu0 %v205
    %225 = vmatprep.subr.bf16.mxu0 0
    %226 = vmatpush1.bf16.msra.mxu0 %v204
    %227 = vmatprep.subr.bf16.mxu0 0
    %228 = vmatpush1.bf16.msra.mxu0 %v203
    %229 = vmatprep.subr.bf16.mxu0 0
    %230 = vmatpush1.bf16.msra.mxu0 %v202
    %231 = vmatprep.subr.bf16.mxu0 0
    %232 = vmatpush1.bf16.msra.mxu0 %v201
    %233 = vmatprep.subr.bf16.mxu0 0
    %234 = vmatpush2.bf16.msra.mxu0 0
    %235 = vmatprep.subr.bf16.mxu0 0
    %236 = vmatpush2.bf16.msra.mxu0 0
    %237 = vmatprep.subr.bf16.mxu0 0
    %238 = vmatpush2.bf16.msra.mxu0 0
    %239 = vmatprep.subr.bf16.mxu0 0
    %240 = vmatpush2.bf16.msra.mxu0 0
    %241 = vmatprep.subr.bf16.mxu0 0
    %242 = vmatpush2.bf16.msra.mxu0 0
    %243 = vmatprep.subr.bf16.mxu0 0
    %244 = vmatpush2.bf16.msra.mxu0 0
    %245 = vmatprep.subr.bf16.mxu0 0
    %246 = vmatpush2.bf16.msra.mxu0 0
    %247 = vmatprep.subr.bf16.mxu0 0
    %248 = vmatpush2.bf16.msra.mxu0 0
    %249 = vmatprep.mubr.bf16.mxu0 0
    %250 = vmatmul.mubr.bf16.gmra.mxu0 %v154
    %v251 = vpop.f32.mrf.mxu0
    %v252 = vadd.f32 0.0, %v251
    %v253 = vpop.f32.mrf.mxu0
    %v254 = vpop.f32.mrf.mxu0
    %v255 = vadd.f32 0.0, %v254
    %v256 = vpop.f32.mrf.mxu0
    %257 = vmatprep.mubr.bf16.mxu0 0
    %258 = vmatmul.mubr.bf16.gmra.mxu0 %v162
    %v259 = vpop.f32.mrf.mxu0
    %v260 = vadd.f32 0.0, %v259
    %v261 = vpop.f32.mrf.mxu0
    %v262 = vpop.f32.mrf.mxu0
    %v263 = vadd.f32 0.0, %v262
    %v264 = vpop.f32.mrf.mxu0
    %265 = vmatprep.mubr.bf16.mxu0 0
    %266 = vmatmul.mubr.bf16.gmra.mxu0 %v165
    %v267 = vpop.f32.mrf.mxu0
    %v268 = vadd.f32 0.0, %v267
    %v269 = vpop.f32.mrf.mxu0
    %v270 = vpop.f32.mrf.mxu0
    %v271 = vpop.f32.mrf.mxu0
    %272 = vdwg.mxu0
    %v278 = vunpack.c.l.b16 %v83
    %v279 = vunpack.c.l.b16 %v84
    %v280 = vunpack.c.l.b16 %v85
    %v281 = vunpack.c.l.b16 %v86
    %v282 = vunpack.c.l.b16 %v87
    %v283 = vpack.c.b16 %v279, %v278
    %v284 = vpack.c.b16 %v281, %v280
    %v285 = vpack.c.b16 %v282, %v282
    %v305 = vunpack.c.l.b16 %v88
    %v306 = vunpack.c.l.b16 %v89
    %v307 = vunpack.c.l.b16 %v90
    %v308 = vunpack.c.l.b16 %v91
    %v309 = vunpack.c.l.b16 %v92
    %v310 = vunpack.c.l.b16 %v93
    %v311 = vunpack.c.l.b16 %v94
    %v312 = vunpack.c.l.b16 %v95
    %v313 = vunpack.c.l.b16 %v96
    %v314 = vunpack.c.l.b16 %v97
    %v315 = vunpack.c.l.b16 %v98
    %v316 = vunpack.c.l.b16 %v99
    %v317 = vunpack.c.l.b16 %v100
    %v318 = vunpack.c.l.b16 %v101
    %v319 = vunpack.c.l.b16 %v102
    %v320 = vunpack.c.l.b16 %v103
    %v321 = vpack.c.b16 %v306, %v305
    %v322 = vpack.c.b16 %v308, %v307
    %v323 = vpack.c.b16 %v310, %v309
    %v324 = vpack.c.b16 %v312, %v311
    %v325 = vpack.c.b16 %v314, %v313
    %v326 = vpack.c.b16 %v316, %v315
    %v327 = vpack.c.b16 %v318, %v317
    %v328 = vpack.c.b16 %v320, %v319
    %337 = vmatprep.subr.bf16.mxu0 0
    %338 = vmatpush1.bf16.msra.mxu0 %v328
    %339 = vmatprep.subr.bf16.mxu0 0
    %340 = vmatpush1.bf16.msra.mxu0 %v327
    %341 = vmatprep.subr.bf16.mxu0 0
    %342 = vmatpush1.bf16.msra.mxu0 %v326
    %343 = vmatprep.subr.bf16.mxu0 0
    %344 = vmatpush1.bf16.msra.mxu0 %v325
    %345 = vmatprep.subr.bf16.mxu0 0
    %346 = vmatpush1.bf16.msra.mxu0 %v324
    %347 = vmatprep.subr.bf16.mxu0 0
    %348 = vmatpush1.bf16.msra.mxu0 %v323
    %349 = vmatprep.subr.bf16.mxu0 0
    %350 = vmatpush1.bf16.msra.mxu0 %v322
    %351 = vmatprep.subr.bf16.mxu0 0
    %352 = vmatpush1.bf16.msra.mxu0 %v321
    %353 = vmatprep.subr.bf16.mxu0 0
    %354 = vmatpush2.bf16.msra.mxu0 0
    %355 = vmatprep.subr.bf16.mxu0 0
    %356 = vmatpush2.bf16.msra.mxu0 0
    %357 = vmatprep.subr.bf16.mxu0 0
    %358 = vmatpush2.bf16.msra.mxu0 0
    %359 = vmatprep.subr.bf16.mxu0 0
    %360 = vmatpush2.bf16.msra.mxu0 0
    %361 = vmatprep.subr.bf16.mxu0 0
    %362 = vmatpush2.bf16.msra.mxu0 0
    %363 = vmatprep.subr.bf16.mxu0 0
    %364 = vmatpush2.bf16.msra.mxu0 0
    %365 = vmatprep.subr.bf16.mxu0 0
    %366 = vmatpush2.bf16.msra.mxu0 0
    %367 = vmatprep.subr.bf16.mxu0 0
    %368 = vmatpush2.bf16.msra.mxu0 0
    %369 = vmatprep.mubr.bf16.mxu0 0
    %370 = vmatmul.mubr.bf16.gmra.mxu0 %v283
    %v371 = vpop.f32.mrf.mxu0
    %v372 = vadd.f32 %v252, %v371
    %v373 = vpop.f32.mrf.mxu0
    %v374 = vpop.f32.mrf.mxu0
    %v375 = vadd.f32 %v255, %v374
    %v376 = vpop.f32.mrf.mxu0
    %377 = vmatprep.mubr.bf16.mxu0 0
    %378 = vmatmul.mubr.bf16.gmra.mxu0 %v284
    %v379 = vpop.f32.mrf.mxu0
    %v380 = vadd.f32 %v260, %v379
    %v381 = vpop.f32.mrf.mxu0
    %v382 = vpop.f32.mrf.mxu0
    %v383 = vadd.f32 %v263, %v382
    %v384 = vpop.f32.mrf.mxu0
    %385 = vmatprep.mubr.bf16.mxu0 0
    %386 = vmatmul.mubr.bf16.gmra.mxu0 %v285
    %v387 = vpop.f32.mrf.mxu0
    %v388 = vadd.f32 %v268, %v387
    %v389 = vpop.f32.mrf.mxu0
    %v390 = vpop.f32.mrf.mxu0
    %v391 = vpop.f32.mrf.mxu0
    %392 = vdwg.mxu0
    %v393 = vld [vmem:[#allocation3] sm:$0xe]
    %s394 = scalar_lea.vmem [#allocation6], 128
    %v395 = vld [vmem:[%s394] sm:$0xf]
    %v396 = vld [vmem:[%s394 + $0x4] sm:$0xf]
    %v397 = vld [vmem:[%s394 + $0x8] sm:$0xf]
    %v398 = vld [vmem:[%s394 + $0xc] sm:$0xf]
    %v399 = vld [vmem:[%s394 + $0x10] sm:$0xf]
    %v400 = vld [vmem:[%s394 + $0x14] sm:$0xf]
    %v401 = vld [vmem:[%s394 + $0x18] sm:$0xf]
    %v402 = vld [vmem:[%s394 + $0x1c] sm:$0xf]
    %v403 = vld [vmem:[%s394 + $0x20] sm:$0xf]
    %v404 = vld [vmem:[%s394 + $0x24] sm:$0xf]
    %v405 = vld [vmem:[%s394 + $0x28] sm:$0xf]
    %v406 = vld [vmem:[%s394 + $0x2c] sm:$0xf]
    %v407 = vld [vmem:[%s394 + $0x30] sm:$0xf]
    %v408 = vld [vmem:[%s394 + $0x34] sm:$0xf]
    %v409 = vld [vmem:[%s394 + $0x38] sm:$0xf]
    %v410 = vld [vmem:[%s394 + $0x3c] sm:$0xf]
    %v412 = vunpack.c.l.b16 %v393
    %v413 = vpack.c.b16 %v134, %v412
    %vm414 = vcmask 1046528
    %v415 = vrot.slane %v413, 1
    %v416 = vrot.slane %v140, 1
    %v417 = vsel %vm414, %v415, %v416
    %v418 = vrot.slane %v141, 1
    %v419 = vsel %vm414, %v416, %v418
    %v439 = vunpack.c.l.b16 %v395
    %v440 = vunpack.c.l.b16 %v396
    %v441 = vunpack.c.l.b16 %v397
    %v442 = vunpack.c.l.b16 %v398
    %v443 = vunpack.c.l.b16 %v399
    %v444 = vunpack.c.l.b16 %v400
    %v445 = vunpack.c.l.b16 %v401
    %v446 = vunpack.c.l.b16 %v402
    %v447 = vunpack.c.l.b16 %v403
    %v448 = vunpack.c.l.b16 %v404
    %v449 = vunpack.c.l.b16 %v405
    %v450 = vunpack.c.l.b16 %v406
    %v451 = vunpack.c.l.b16 %v407
    %v452 = vunpack.c.l.b16 %v408
    %v453 = vunpack.c.l.b16 %v409
    %v454 = vunpack.c.l.b16 %v410
    %v455 = vpack.c.b16 %v440, %v439
    %v456 = vpack.c.b16 %v442, %v441
    %v457 = vpack.c.b16 %v444, %v443
    %v458 = vpack.c.b16 %v446, %v445
    %v459 = vpack.c.b16 %v448, %v447
    %v460 = vpack.c.b16 %v450, %v449
    %v461 = vpack.c.b16 %v452, %v451
    %v462 = vpack.c.b16 %v454, %v453
    %471 = vmatprep.subr.bf16.mxu0 0
    %472 = vmatpush1.bf16.msra.mxu0 %v462
    %473 = vmatprep.subr.bf16.mxu0 0
    %474 = vmatpush1.bf16.msra.mxu0 %v461
    %475 = vmatprep.subr.bf16.mxu0 0
    %476 = vmatpush1.bf16.msra.mxu0 %v460
    %477 = vmatprep.subr.bf16.mxu0 0
    %478 = vmatpush1.bf16.msra.mxu0 %v459
    %479 = vmatprep.subr.bf16.mxu0 0
    %480 = vmatpush1.bf16.msra.mxu0 %v458
    %481 = vmatprep.subr.bf16.mxu0 0
    %482 = vmatpush1.bf16.msra.mxu0 %v457
    %483 = vmatprep.subr.bf16.mxu0 0
    %484 = vmatpush1.bf16.msra.mxu0 %v456
    %485 = vmatprep.subr.bf16.mxu0 0
    %486 = vmatpush1.bf16.msra.mxu0 %v455
    %487 = vmatprep.subr.bf16.mxu0 0
    %488 = vmatpush2.bf16.msra.mxu0 0
    %489 = vmatprep.subr.bf16.mxu0 0
    %490 = vmatpush2.bf16.msra.mxu0 0
    %491 = vmatprep.subr.bf16.mxu0 0
    %492 = vmatpush2.bf16.msra.mxu0 0
    %493 = vmatprep.subr.bf16.mxu0 0
    %494 = vmatpush2.bf16.msra.mxu0 0
    %495 = vmatprep.subr.bf16.mxu0 0
    %496 = vmatpush2.bf16.msra.mxu0 0
    %497 = vmatprep.subr.bf16.mxu0 0
    %498 = vmatpush2.bf16.msra.mxu0 0
    %499 = vmatprep.subr.bf16.mxu0 0
    %500 = vmatpush2.bf16.msra.mxu0 0
    %501 = vmatprep.subr.bf16.mxu0 0
    %502 = vmatpush2.bf16.msra.mxu0 0
    %503 = vmatprep.mubr.bf16.mxu0 0
    %504 = vmatmul.mubr.bf16.gmra.mxu0 %v417
    %v505 = vpop.f32.mrf.mxu0
    %v506 = vadd.f32 0.0, %v505
    %v507 = vpop.f32.mrf.mxu0
    %v508 = vpop.f32.mrf.mxu0
    %v509 = vadd.f32 0.0, %v508
    %v510 = vpop.f32.mrf.mxu0
    %511 = vmatprep.mubr.bf16.mxu0 0
    %512 = vmatmul.mubr.bf16.gmra.mxu0 %v419
    %v513 = vpop.f32.mrf.mxu0
    %v514 = vadd.f32 0.0, %v513
    %v515 = vpop.f32.mrf.mxu0
    %v516 = vpop.f32.mrf.mxu0
    %v517 = vadd.f32 0.0, %v516
    %v518 = vpop.f32.mrf.mxu0
    %519 = vmatprep.mubr.bf16.mxu0 0
    %520 = vmatmul.mubr.bf16.gmra.mxu0 %v418
    %v521 = vpop.f32.mrf.mxu0
    %v522 = vadd.f32 0.0, %v521
    %v523 = vpop.f32.mrf.mxu0
    %v524 = vpop.f32.mrf.mxu0
    %v525 = vpop.f32.mrf.mxu0
    %526 = vdwg.mxu0
    %v527 = vadd.f32 %v372, %v506
    %v528 = vadd.f32 %v375, %v509
    %v529 = vadd.f32 %v380, %v514
    %v530 = vadd.f32 %v383, %v517
    %v531 = vadd.f32 %v388, %v522
    %v532 = vld [vmem:[%s2] sm:$0x1]
    %v534 = vlaneseq
    %v535 = vshrl.u32 %v534, 7
    %v536 = vsub.s32 0, %v535
    %v537 = vrot.slane %v532, %v536
    %v539 = vadd.f32 %v527, %v537
    %v540 = vadd.f32 %v528, %v537
    %v541 = vadd.f32 %v529, %v537
    %v542 = vadd.f32 %v530, %v537
    %v543 = vadd.f32 %v531, %v537
    %v544 = vmax.f32 %v539, 0.0
    %v545 = vmax.f32 %v540, 0.0
    %v546 = vmax.f32 %v541, 0.0
    %v547 = vmax.f32 %v542, 0.0
    %v548 = vmax.f32 %v543, 0.0
    %v549 = vlaneseq
    %v550 = vshrl.u32 %v549, 7
    %v551 = vadd.s32 %v550, 8
    %v552 = vadd.s32 %v550, 16
    %v553 = vadd.s32 %v550, 24
    %v554 = vadd.s32 %v550, 32
    %vm555 = vcmp.lt.s32.totalorder %v550, 0
    %v556 = vsub.s32 0, %v550
    %v557 = vsel %vm555, %v556, %v550
    %v558 = vmul.u32.u64.compose %v557, 2863311531
    %v559 = vextract.low.u32 %v558
    %v560 = vextract.high.u32 %v558
    %v561 = vshrl.u32 %v560, 4
    %v562 = vmul.u32 %v561, 24
    %v563 = vsub.s32 %v557, %v562
    %v564 = vsub.s32 0, %v563
    %v565 = vsel %vm555, %v564, %v563
    %vm566 = vcmp.lt.s32.totalorder %v551, 0
    %v567 = vsub.s32 0, %v551
    %v568 = vsel %vm566, %v567, %v551
    %v569 = vmul.u32.u64.compose %v568, 2863311531
    %v570 = vextract.low.u32 %v569
    %v571 = vextract.high.u32 %v569
    %v572 = vshrl.u32 %v571, 4
    %v573 = vmul.u32 %v572, 24
    %v574 = vsub.s32 %v568, %v573
    %v575 = vsub.s32 0, %v574
    %v576 = vsel %vm566, %v575, %v574
    %vm577 = vcmp.lt.s32.totalorder %v552, 0
    %v578 = vsub.s32 0, %v552
    %v579 = vsel %vm577, %v578, %v552
    %v580 = vmul.u32.u64.compose %v579, 2863311531
    %v581 = vextract.low.u32 %v580
    %v582 = vextract.high.u32 %v580
    %v583 = vshrl.u32 %v582, 4
    %v584 = vmul.u32 %v583, 24
    %v585 = vsub.s32 %v579, %v584
    %v586 = vsub.s32 0, %v585
    %v587 = vsel %vm577, %v586, %v585
    %vm588 = vcmp.lt.s32.totalorder %v553, 0
    %v589 = vsub.s32 0, %v553
    %v590 = vsel %vm588, %v589, %v553
    %v591 = vmul.u32.u64.compose %v590, 2863311531
    %v592 = vextract.low.u32 %v591
    %v593 = vextract.high.u32 %v591
    %v594 = vshrl.u32 %v593, 4
    %v595 = vmul.u32 %v594, 24
    %v596 = vsub.s32 %v590, %v595
    %v597 = vsub.s32 0, %v596
    %v598 = vsel %vm588, %v597, %v596
    %vm599 = vcmp.lt.s32.totalorder %v554, 0
    %v600 = vsub.s32 0, %v554
    %v601 = vsel %vm599, %v600, %v554
    %v602 = vmul.u32.u64.compose %v601, 2863311531
    %v603 = vextract.low.u32 %v602
    %v604 = vextract.high.u32 %v602
    %v605 = vshrl.u32 %v604, 4
    %v606 = vmul.u32 %v605, 24
    %v607 = vsub.s32 %v601, %v606
    %v608 = vsub.s32 0, %v607
    %v609 = vsel %vm599, %v608, %v607
    %vm610 = vcmp.ne.s32.totalorder %v565, 0
    %vm611 = vcmp.ne.s32.totalorder %v576, 0
    %vm612 = vcmp.ne.s32.totalorder %v587, 0
    %vm613 = vcmp.ne.s32.totalorder %v598, 0
    %vm614 = vcmp.ne.s32.totalorder %v609, 0
    %vm615 = vcmp.lt.s32.totalorder %v565, 0
    %vm616 = vcmp.lt.s32.totalorder %v576, 0
    %vm617 = vcmp.lt.s32.totalorder %v587, 0
    %vm618 = vcmp.lt.s32.totalorder %v598, 0
    %vm619 = vcmp.lt.s32.totalorder %v609, 0
    %vm620 = vmand %vm615, %vm610
    %vm621 = vmand %vm616, %vm611
    %vm622 = vmand %vm617, %vm612
    %vm623 = vmand %vm618, %vm613
    %vm624 = vmand %vm619, %vm614
    %v625 = vadd.s32 %v565, 24
    %v626 = vadd.s32 %v576, 24
    %v627 = vadd.s32 %v587, 24
    %v628 = vadd.s32 %v598, 24
    %v629 = vadd.s32 %v609, 24
    %v630 = vsel %vm620, %v625, %v565
    %v631 = vsel %vm621, %v626, %v576
    %v632 = vsel %vm622, %v627, %v587
    %v633 = vsel %vm623, %v628, %v598
    %v634 = vsel %vm624, %v629, %v609
    %vm635 = vcmp.lt.s32.totalorder %v630, 16
    %vm636 = vcmp.lt.s32.totalorder %v631, 16
    %vm637 = vcmp.lt.s32.totalorder %v632, 16
    %vm638 = vcmp.lt.s32.totalorder %v633, 16
    %vm639 = vcmp.lt.s32.totalorder %v634, 16
    %v640 = vsel %vm635, 1, 0
    %v641 = vsel %vm636, 1, 0
    %v642 = vsel %vm637, 1, 0
    %v643 = vsel %vm638, 1, 0
    %v644 = vsel %vm639, 1, 0
    %vm645 = vcmp.eq.s32.totalorder %v640, 1
    %vm646 = vcmp.eq.s32.totalorder %v641, 1
    %vm647 = vcmp.eq.s32.totalorder %v642, 1
    %vm648 = vcmp.eq.s32.totalorder %v643, 1
    %vm649 = vcmp.eq.s32.totalorder %v644, 1
    %v650 = vsel %vm645, %v544, 0.0
    %v651 = vsel %vm646, %v545, 0.0
    %v652 = vsel %vm647, %v546, 0.0
    %v653 = vsel %vm648, %v547, 0.0
    %v654 = vsel %vm649, %v548, 0.0
    %v655 = vpack.c.bf16 %v651, %v650
    %v656 = vpack.c.bf16 %v653, %v652
    %v657 = vpack.c.bf16 %v654, %v654
    %p658 = scmp.eq.s32.totalorder 0, 0
    // Predicated region
    $region46: #{tpu_custom_call.1} parent=1 // pred_check
      %p659 = pneg %p658
    $region47: #{tpu_custom_call.1} parent=1 // pred_check_branch
      %661 = sbr.rel (%p659) target = $region49
    $region48: #{tpu_custom_call.1} parent=1 // pred_region
      %662 = vst [vmem:[#allocation2] sm:$0xf] 0
    $region49: #{tpu_custom_call.1} parent=1 // pred_fallthru
      _
    %v666 = vunpack.c.l.b16 %v655
    %v667 = vunpack.c.h.b16 %v655
    %v668 = vunpack.c.l.b16 %v656
    %v669 = vunpack.c.h.b16 %v656
    %v670 = vunpack.c.l.b16 %v657
    %v671 = vpack.c.b16 %v666, %v666
    %v672 = vpack.c.b16 %v667, %v667
    %v673 = vpack.c.b16 %v668, %v668
    %v674 = vpack.c.b16 %v669, %v669
    %v675 = vpack.c.b16 %v670, %v670
    %681 = vst [vmem:[#allocation2 + $0x4] sm:$0xf] %v671
    %682 = vst [vmem:[#allocation2 + $0x8] sm:$0xf] %v672
    %683 = vst [vmem:[#allocation2 + $0xc] sm:$0xf] %v673
    %684 = vst [vmem:[#allocation2 + $0x10] sm:$0xf] %v674
    %685 = vst [vmem:[#allocation2 + $0x14] sm:$0xf] %v675
    %v686 = vld [vmem:[#allocation2] sm:$0x8]
    %v687 = vld [vmem:[#allocation2 + $0x4] sm:$0xf]
    %v688 = vld [vmem:[#allocation2 + $0x8] sm:$0xf]
    %v689 = vld [vmem:[#allocation2 + $0xc] sm:$0xf]
    %v690 = vld [vmem:[#allocation2 + $0x10] sm:$0xf]
    %v691 = vld [vmem:[#allocation2 + $0x14] sm:$0x7]
    %v692 = vld [vmem:[#allocation8] sm:$0xf]
    %v693 = vld [vmem:[#allocation8 + $0x4] sm:$0xf]
    %v694 = vld [vmem:[#allocation8 + $0x8] sm:$0xf]
    %v695 = vld [vmem:[#allocation8 + $0xc] sm:$0xf]
    %v696 = vld [vmem:[#allocation8 + $0x10] sm:$0xf]
    %v697 = vld [vmem:[#allocation8 + $0x14] sm:$0xf]
    %v698 = vld [vmem:[#allocation8 + $0x18] sm:$0xf]
    %v699 = vld [vmem:[#allocation8 + $0x1c] sm:$0xf]
    %v700 = vld [vmem:[#allocation8 + $0x20] sm:$0xf]
    %v701 = vld [vmem:[#allocation8 + $0x24] sm:$0xf]
    %v702 = vld [vmem:[#allocation8 + $0x28] sm:$0xf]
    %v703 = vld [vmem:[#allocation8 + $0x2c] sm:$0xf]
    %v704 = vld [vmem:[#allocation8 + $0x30] sm:$0xf]
    %v705 = vld [vmem:[#allocation8 + $0x34] sm:$0xf]
    %v706 = vld [vmem:[#allocation8 + $0x38] sm:$0xf]
    %v707 = vld [vmem:[#allocation8 + $0x3c] sm:$0xf]
    %v708 = vld [vmem:[#allocation2 + $0x14] sm:$0xf]
    %s709 = scalar_lea.vmem [#allocation8], 64
    %v710 = vld [vmem:[%s709] sm:$0xf]
    %v711 = vld [vmem:[%s709 + $0x4] sm:$0xf]
    %v712 = vld [vmem:[%s709 + $0x8] sm:$0xf]
    %v713 = vld [vmem:[%s709 + $0xc] sm:$0xf]
    %v714 = vld [vmem:[%s709 + $0x10] sm:$0xf]
    %v715 = vld [vmem:[%s709 + $0x14] sm:$0xf]
    %v716 = vld [vmem:[%s709 + $0x18] sm:$0xf]
    %v717 = vld [vmem:[%s709 + $0x1c] sm:$0xf]
    %v718 = vld [vmem:[%s709 + $0x20] sm:$0xf]
    %v719 = vld [vmem:[%s709 + $0x24] sm:$0xf]
    %v720 = vld [vmem:[%s709 + $0x28] sm:$0xf]
    %v721 = vld [vmem:[%s709 + $0x2c] sm:$0xf]
    %v722 = vld [vmem:[%s709 + $0x30] sm:$0xf]
    %v723 = vld [vmem:[%s709 + $0x34] sm:$0xf]
    %v724 = vld [vmem:[%s709 + $0x38] sm:$0xf]
    %v725 = vld [vmem:[%s709 + $0x3c] sm:$0xf]
    %v732 = vunpack.c.l.b16 %v686
    %v733 = vunpack.c.l.b16 %v687
    %v734 = vunpack.c.l.b16 %v688
    %v735 = vunpack.c.l.b16 %v689
    %v736 = vunpack.c.l.b16 %v690
    %v737 = vunpack.c.l.b16 %v708
    %v738 = vpack.c.b16 %v733, %v732
    %v739 = vpack.c.b16 %v735, %v734
    %v740 = vpack.c.b16 %v737, %v736
    %vm741 = vsmask.f32 4352
    %v743 = vshrl.u32 %v738, 16
    %v745 = vrot.slane %v743, 3
    %v746 = vshll.u32 %v738, 16
    %v748 = vrot.slane %v746, 4
    %v749 = vor.u32 %v745, %v748
    %v751 = vshrl.u32 %v739, 16
    %v753 = vrot.slane %v751, 3
    %v754 = vshll.u32 %v739, 16
    %v756 = vrot.slane %v754, 4
    %v757 = vor.u32 %v753, %v756
    %v758 = vsel %vm741, %v749, %v757
    %v760 = vshrl.u32 %v740, 16
    %v762 = vrot.slane %v760, 3
    %v763 = vshll.u32 %v740, 16
    %v765 = vrot.slane %v763, 4
    %v766 = vor.u32 %v762, %v765
    %v767 = vsel %vm741, %v757, %v766
    %v787 = vunpack.c.l.b16 %v710
    %v788 = vunpack.c.l.b16 %v711
    %v789 = vunpack.c.l.b16 %v712
    %v790 = vunpack.c.l.b16 %v713
    %v791 = vunpack.c.l.b16 %v714
    %v792 = vunpack.c.l.b16 %v715
    %v793 = vunpack.c.l.b16 %v716
    %v794 = vunpack.c.l.b16 %v717
    %v795 = vunpack.c.l.b16 %v718
    %v796 = vunpack.c.l.b16 %v719
    %v797 = vunpack.c.l.b16 %v720
    %v798 = vunpack.c.l.b16 %v721
    %v799 = vunpack.c.l.b16 %v722
    %v800 = vunpack.c.l.b16 %v723
    %v801 = vunpack.c.l.b16 %v724
    %v802 = vunpack.c.l.b16 %v725
    %v803 = vpack.c.b16 %v788, %v787
    %v804 = vpack.c.b16 %v790, %v789
    %v805 = vpack.c.b16 %v792, %v791
    %v806 = vpack.c.b16 %v794, %v793
    %v807 = vpack.c.b16 %v796, %v795
    %v808 = vpack.c.b16 %v798, %v797
    %v809 = vpack.c.b16 %v800, %v799
    %v810 = vpack.c.b16 %v802, %v801
    %819 = vmatprep.subr.bf16.mxu0 0
    %820 = vmatpush1.bf16.msra.mxu0 %v810
    %821 = vmatprep.subr.bf16.mxu0 0
    %822 = vmatpush1.bf16.msra.mxu0 %v809
    %823 = vmatprep.subr.bf16.mxu0 0
    %824 = vmatpush1.bf16.msra.mxu0 %v808
    %825 = vmatprep.subr.bf16.mxu0 0
    %826 = vmatpush1.bf16.msra.mxu0 %v807
    %827 = vmatprep.subr.bf16.mxu0 0
    %828 = vmatpush1.bf16.msra.mxu0 %v806
    %829 = vmatprep.subr.bf16.mxu0 0
    %830 = vmatpush1.bf16.msra.mxu0 %v805
    %831 = vmatprep.subr.bf16.mxu0 0
    %832 = vmatpush1.bf16.msra.mxu0 %v804
    %833 = vmatprep.subr.bf16.mxu0 0
    %834 = vmatpush1.bf16.msra.mxu0 %v803
    %835 = vmatprep.subr.bf16.mxu0 0
    %836 = vmatpush2.bf16.msra.mxu0 0
    %837 = vmatprep.subr.bf16.mxu0 0
    %838 = vmatpush2.bf16.msra.mxu0 0
    %839 = vmatprep.subr.bf16.mxu0 0
    %840 = vmatpush2.bf16.msra.mxu0 0
    %841 = vmatprep.subr.bf16.mxu0 0
    %842 = vmatpush2.bf16.msra.mxu0 0
    %843 = vmatprep.subr.bf16.mxu0 0
    %844 = vmatpush2.bf16.msra.mxu0 0
    %845 = vmatprep.subr.bf16.mxu0 0
    %846 = vmatpush2.bf16.msra.mxu0 0
    %847 = vmatprep.subr.bf16.mxu0 0
    %848 = vmatpush2.bf16.msra.mxu0 0
    %849 = vmatprep.subr.bf16.mxu0 0
    %850 = vmatpush2.bf16.msra.mxu0 0
    %851 = vmatprep.mubr.bf16.mxu0 0
    %852 = vmatmul.mubr.bf16.gmra.mxu0 %v758
    %v853 = vpop.f32.mrf.mxu0
    %v854 = vadd.f32 0.0, %v853
    %v855 = vpop.f32.mrf.mxu0
    %v856 = vpop.f32.mrf.mxu0
    %v857 = vadd.f32 0.0, %v856
    %v858 = vpop.f32.mrf.mxu0
    %859 = vmatprep.mubr.bf16.mxu0 0
    %860 = vmatmul.mubr.bf16.gmra.mxu0 %v767
    %v861 = vpop.f32.mrf.mxu0
    %v862 = vadd.f32 0.0, %v861
    %v863 = vpop.f32.mrf.mxu0
    %v864 = vpop.f32.mrf.mxu0
    %v865 = vadd.f32 0.0, %v864
    %v866 = vpop.f32.mrf.mxu0
    %867 = vmatprep.mubr.bf16.mxu0 0
    %868 = vmatmul.mubr.bf16.gmra.mxu0 %v766
    %v869 = vpop.f32.mrf.mxu0
    %v870 = vadd.f32 0.0, %v869
    %v871 = vpop.f32.mrf.mxu0
    %v872 = vpop.f32.mrf.mxu0
    %v873 = vpop.f32.mrf.mxu0
    %874 = vdwg.mxu0
    %v876 = vunpack.c.l.b16 %v691
    %v877 = vpack.c.b16 %v876, %v736
    %vm878 = vcmask 1044480
    %v879 = vrot.slane %v738, 3
    %v880 = vrot.slane %v739, 3
    %v881 = vsel %vm878, %v879, %v880
    %v882 = vrot.slane %v877, 3
    %v883 = vsel %vm878, %v880, %v882
    %v903 = vunpack.c.l.b16 %v692
    %v904 = vunpack.c.l.b16 %v693
    %v905 = vunpack.c.l.b16 %v694
    %v906 = vunpack.c.l.b16 %v695
    %v907 = vunpack.c.l.b16 %v696
    %v908 = vunpack.c.l.b16 %v697
    %v909 = vunpack.c.l.b16 %v698
    %v910 = vunpack.c.l.b16 %v699
    %v911 = vunpack.c.l.b16 %v700
    %v912 = vunpack.c.l.b16 %v701
    %v913 = vunpack.c.l.b16 %v702
    %v914 = vunpack.c.l.b16 %v703
    %v915 = vunpack.c.l.b16 %v704
    %v916 = vunpack.c.l.b16 %v705
    %v917 = vunpack.c.l.b16 %v706
    %v918 = vunpack.c.l.b16 %v707
    %v919 = vpack.c.b16 %v904, %v903
    %v920 = vpack.c.b16 %v906, %v905
    %v921 = vpack.c.b16 %v908, %v907
    %v922 = vpack.c.b16 %v910, %v909
    %v923 = vpack.c.b16 %v912, %v911
    %v924 = vpack.c.b16 %v914, %v913
    %v925 = vpack.c.b16 %v916, %v915
    %v926 = vpack.c.b16 %v918, %v917
    %935 = vmatprep.subr.bf16.mxu0 0
    %936 = vmatpush1.bf16.msra.mxu0 %v926
    %937 = vmatprep.subr.bf16.mxu0 0
    %938 = vmatpush1.bf16.msra.mxu0 %v925
    %939 = vmatprep.subr.bf16.mxu0 0
    %940 = vmatpush1.bf16.msra.mxu0 %v924
    %941 = vmatprep.subr.bf16.mxu0 0
    %942 = vmatpush1.bf16.msra.mxu0 %v923
    %943 = vmatprep.subr.bf16.mxu0 0
    %944 = vmatpush1.bf16.msra.mxu0 %v922
    %945 = vmatprep.subr.bf16.mxu0 0
    %946 = vmatpush1.bf16.msra.mxu0 %v921
    %947 = vmatprep.subr.bf16.mxu0 0
    %948 = vmatpush1.bf16.msra.mxu0 %v920
    %949 = vmatprep.subr.bf16.mxu0 0
    %950 = vmatpush1.bf16.msra.mxu0 %v919
    %951 = vmatprep.subr.bf16.mxu0 0
    %952 = vmatpush2.bf16.msra.mxu0 0
    %953 = vmatprep.subr.bf16.mxu0 0
    %954 = vmatpush2.bf16.msra.mxu0 0
    %955 = vmatprep.subr.bf16.mxu0 0
    %956 = vmatpush2.bf16.msra.mxu0 0
    %957 = vmatprep.subr.bf16.mxu0 0
    %958 = vmatpush2.bf16.msra.mxu0 0
    %959 = vmatprep.subr.bf16.mxu0 0
    %960 = vmatpush2.bf16.msra.mxu0 0
    %961 = vmatprep.subr.bf16.mxu0 0
    %962 = vmatpush2.bf16.msra.mxu0 0
    %963 = vmatprep.subr.bf16.mxu0 0
    %964 = vmatpush2.bf16.msra.mxu0 0
    %965 = vmatprep.subr.bf16.mxu0 0
    %966 = vmatpush2.bf16.msra.mxu0 0
    %967 = vmatprep.mubr.bf16.mxu0 0
    %968 = vmatmul.mubr.bf16.gmra.mxu0 %v881
    %v969 = vpop.f32.mrf.mxu0
    %v970 = vadd.f32 %v854, %v969
    %v971 = vpop.f32.mrf.mxu0
    %v972 = vpop.f32.mrf.mxu0
    %v973 = vadd.f32 %v857, %v972
    %v974 = vpop.f32.mrf.mxu0
    %975 = vmatprep.mubr.bf16.mxu0 0
    %976 = vmatmul.mubr.bf16.gmra.mxu0 %v883
    %v977 = vpop.f32.mrf.mxu0
    %v978 = vadd.f32 %v862, %v977
    %v979 = vpop.f32.mrf.mxu0
    %v980 = vpop.f32.mrf.mxu0
    %v981 = vadd.f32 %v865, %v980
    %v982 = vpop.f32.mrf.mxu0
    %983 = vmatprep.mubr.bf16.mxu0 0
    %984 = vmatmul.mubr.bf16.gmra.mxu0 %v882
    %v985 = vpop.f32.mrf.mxu0
    %v986 = vadd.f32 %v870, %v985
    %v987 = vpop.f32.mrf.mxu0
    %v988 = vpop.f32.mrf.mxu0
    %v989 = vpop.f32.mrf.mxu0
    %990 = vdwg.mxu0
    %s991 = scalar_lea.vmem [#allocation8], 128
    %v992 = vld [vmem:[%s991] sm:$0xf]
    %v993 = vld [vmem:[%s991 + $0x4] sm:$0xf]
    %v994 = vld [vmem:[%s991 + $0x8] sm:$0xf]
    %v995 = vld [vmem:[%s991 + $0xc] sm:$0xf]
    %v996 = vld [vmem:[%s991 + $0x10] sm:$0xf]
    %v997 = vld [vmem:[%s991 + $0x14] sm:$0xf]
    %v998 = vld [vmem:[%s991 + $0x18] sm:$0xf]
    %v999 = vld [vmem:[%s991 + $0x1c] sm:$0xf]
    %v1000 = vld [vmem:[%s991 + $0x20] sm:$0xf]
    %v1001 = vld [vmem:[%s991 + $0x24] sm:$0xf]
    %v1002 = vld [vmem:[%s991 + $0x28] sm:$0xf]
    %v1003 = vld [vmem:[%s991 + $0x2c] sm:$0xf]
    %v1004 = vld [vmem:[%s991 + $0x30] sm:$0xf]
    %v1005 = vld [vmem:[%s991 + $0x34] sm:$0xf]
    %v1006 = vld [vmem:[%s991 + $0x38] sm:$0xf]
    %v1007 = vld [vmem:[%s991 + $0x3c] sm:$0xf]
    %v1008 = vpack.c.b16 %v734, %v733
    %v1009 = vpack.c.b16 %v736, %v735
    %v1010 = vpack.c.b16 %v737, %v737
    %v1030 = vunpack.c.l.b16 %v992
    %v1031 = vunpack.c.l.b16 %v993
    %v1032 = vunpack.c.l.b16 %v994
    %v1033 = vunpack.c.l.b16 %v995
    %v1034 = vunpack.c.l.b16 %v996
    %v1035 = vunpack.c.l.b16 %v997
    %v1036 = vunpack.c.l.b16 %v998
    %v1037 = vunpack.c.l.b16 %v999
    %v1038 = vunpack.c.l.b16 %v1000
    %v1039 = vunpack.c.l.b16 %v1001
    %v1040 = vunpack.c.l.b16 %v1002
    %v1041 = vunpack.c.l.b16 %v1003
    %v1042 = vunpack.c.l.b16 %v1004
    %v1043 = vunpack.c.l.b16 %v1005
    %v1044 = vunpack.c.l.b16 %v1006
    %v1045 = vunpack.c.l.b16 %v1007
    %v1046 = vpack.c.b16 %v1031, %v1030
    %v1047 = vpack.c.b16 %v1033, %v1032
    %v1048 = vpack.c.b16 %v1035, %v1034
    %v1049 = vpack.c.b16 %v1037, %v1036
    %v1050 = vpack.c.b16 %v1039, %v1038
    %v1051 = vpack.c.b16 %v1041, %v1040
    %v1052 = vpack.c.b16 %v1043, %v1042
    %v1053 = vpack.c.b16 %v1045, %v1044
    %1062 = vmatprep.subr.bf16.mxu0 0
    %1063 = vmatpush1.bf16.msra.mxu0 %v1053
    %1064 = vmatprep.subr.bf16.mxu0 0
    %1065 = vmatpush1.bf16.msra.mxu0 %v1052
    %1066 = vmatprep.subr.bf16.mxu0 0
    %1067 = vmatpush1.bf16.msra.mxu0 %v1051
    %1068 = vmatprep.subr.bf16.mxu0 0
    %1069 = vmatpush1.bf16.msra.mxu0 %v1050
    %1070 = vmatprep.subr.bf16.mxu0 0
    %1071 = vmatpush1.bf16.msra.mxu0 %v1049
    %1072 = vmatprep.subr.bf16.mxu0 0
    %1073 = vmatpush1.bf16.msra.mxu0 %v1048
    %1074 = vmatprep.subr.bf16.mxu0 0
    %1075 = vmatpush1.bf16.msra.mxu0 %v1047
    %1076 = vmatprep.subr.bf16.mxu0 0
    %1077 = vmatpush1.bf16.msra.mxu0 %v1046
    %1078 = vmatprep.subr.bf16.mxu0 0
    %1079 = vmatpush2.bf16.msra.mxu0 0
    %1080 = vmatprep.subr.bf16.mxu0 0
    %1081 = vmatpush2.bf16.msra.mxu0 0
    %1082 = vmatprep.subr.bf16.mxu0 0
    %1083 = vmatpush2.bf16.msra.mxu0 0
    %1084 = vmatprep.subr.bf16.mxu0 0
    %1085 = vmatpush2.bf16.msra.mxu0 0
    %1086 = vmatprep.subr.bf16.mxu0 0
    %1087 = vmatpush2.bf16.msra.mxu0 0
    %1088 = vmatprep.subr.bf16.mxu0 0
    %1089 = vmatpush2.bf16.msra.mxu0 0
    %1090 = vmatprep.subr.bf16.mxu0 0
    %1091 = vmatpush2.bf16.msra.mxu0 0
    %1092 = vmatprep.subr.bf16.mxu0 0
    %1093 = vmatpush2.bf16.msra.mxu0 0
    %1094 = vmatprep.mubr.bf16.mxu0 0
    %1095 = vmatmul.mubr.bf16.gmra.mxu0 %v1008
    %v1096 = vpop.f32.mrf.mxu0
    %v1097 = vadd.f32 0.0, %v1096
    %v1098 = vpop.f32.mrf.mxu0
    %v1099 = vpop.f32.mrf.mxu0
    %v1100 = vadd.f32 0.0, %v1099
    %v1101 = vpop.f32.mrf.mxu0
    %1102 = vmatprep.mubr.bf16.mxu0 0
    %1103 = vmatmul.mubr.bf16.gmra.mxu0 %v1009
    %v1104 = vpop.f32.mrf.mxu0
    %v1105 = vadd.f32 0.0, %v1104
    %v1106 = vpop.f32.mrf.mxu0
    %v1107 = vpop.f32.mrf.mxu0
    %v1108 = vadd.f32 0.0, %v1107
    %v1109 = vpop.f32.mrf.mxu0
    %1110 = vmatprep.mubr.bf16.mxu0 0
    %1111 = vmatmul.mubr.bf16.gmra.mxu0 %v1010
    %v1112 = vpop.f32.mrf.mxu0
    %v1113 = vadd.f32 0.0, %v1112
    %v1114 = vpop.f32.mrf.mxu0
    %v1115 = vpop.f32.mrf.mxu0
    %v1116 = vpop.f32.mrf.mxu0
    %1117 = vdwg.mxu0
    %v1118 = vadd.f32 %v970, %v1097
    %v1119 = vadd.f32 %v973, %v1100
    %v1120 = vadd.f32 %v978, %v1105
    %v1121 = vadd.f32 %v981, %v1108
    %v1122 = vadd.f32 %v986, %v1113
    %v1123 = vld [vmem:[%s4] sm:$0x1]
    %v1125 = vlaneseq
    %v1126 = vshrl.u32 %v1125, 7
    %v1127 = vsub.s32 0, %v1126
    %v1128 = vrot.slane %v1123, %v1127
    %v1130 = vadd.f32 %v1118, %v1128
    %v1131 = vadd.f32 %v1119, %v1128
    %v1132 = vadd.f32 %v1120, %v1128
    %v1133 = vadd.f32 %v1121, %v1128
    %v1134 = vadd.f32 %v1122, %v1128
    %v1135 = vmax.f32 %v1130, 0.0
    %v1136 = vmax.f32 %v1131, 0.0
    %v1137 = vmax.f32 %v1132, 0.0
    %v1138 = vmax.f32 %v1133, 0.0
    %v1139 = vmax.f32 %v1134, 0.0
    %v1140 = vld [vmem:[#allocation3] sm:$0xe]
    %v1141 = vld [vmem:[#allocation3 + $0x4] sm:$0xf]
    %v1142 = vld [vmem:[#allocation3 + $0x8] sm:$0xf]
    %v1143 = vld [vmem:[#allocation3 + $0xc] sm:$0xf]
    %v1144 = vld [vmem:[#allocation3 + $0x10] sm:$0xf]
    %v1145 = vld [vmem:[#allocation3 + $0x14] sm:$0x1]
    %v1146 = vld [vmem:[#allocation9] sm:$0xf]
    %v1147 = vld [vmem:[#allocation9 + $0x4] sm:$0xf]
    %v1148 = vld [vmem:[#allocation9 + $0x8] sm:$0xf]
    %v1149 = vld [vmem:[#allocation9 + $0xc] sm:$0xf]
    %v1150 = vld [vmem:[#allocation9 + $0x10] sm:$0xf]
    %v1151 = vld [vmem:[#allocation9 + $0x14] sm:$0xf]
    %v1152 = vld [vmem:[#allocation9 + $0x18] sm:$0xf]
    %v1153 = vld [vmem:[#allocation9 + $0x1c] sm:$0xf]
    %v1154 = vld [vmem:[#allocation9 + $0x20] sm:$0xf]
    %v1155 = vld [vmem:[#allocation9 + $0x24] sm:$0xf]
    %v1156 = vld [vmem:[#allocation9 + $0x28] sm:$0xf]
    %v1157 = vld [vmem:[#allocation9 + $0x2c] sm:$0xf]
    %v1158 = vld [vmem:[#allocation9 + $0x30] sm:$0xf]
    %v1159 = vld [vmem:[#allocation9 + $0x34] sm:$0xf]
    %v1160 = vld [vmem:[#allocation9 + $0x38] sm:$0xf]
    %v1161 = vld [vmem:[#allocation9 + $0x3c] sm:$0xf]
    %v1162 = vld [vmem:[%s6] sm:$0x1]
    %v1164 = vlaneseq
    %v1165 = vshrl.u32 %v1164, 7
    %v1166 = vsub.s32 0, %v1165
    %v1167 = vrot.slane %v1162, %v1166
    %v1175 = vunpack.c.l.b16 %v1140
    %v1176 = vunpack.c.l.b16 %v1141
    %v1177 = vunpack.c.l.b16 %v1142
    %v1178 = vunpack.c.l.b16 %v1143
    %v1179 = vunpack.c.l.b16 %v1144
    %v1180 = vunpack.c.l.b16 %v1145
    %v1181 = vpack.c.b16 %v1176, %v1175
    %v1182 = vpack.c.b16 %v1178, %v1177
    %v1183 = vpack.c.b16 %v1180, %v1179
    %v1184 = vrot.slane %v1181, 1
    %v1185 = vrot.slane %v1182, 1
    %v1186 = vsel %vm414, %v1184, %v1185
    %v1187 = vrot.slane %v1183, 1
    %v1188 = vsel %vm414, %v1185, %v1187
    %v1208 = vunpack.c.l.b16 %v1146
    %v1209 = vunpack.c.l.b16 %v1147
    %v1210 = vunpack.c.l.b16 %v1148
    %v1211 = vunpack.c.l.b16 %v1149
    %v1212 = vunpack.c.l.b16 %v1150
    %v1213 = vunpack.c.l.b16 %v1151
    %v1214 = vunpack.c.l.b16 %v1152
    %v1215 = vunpack.c.l.b16 %v1153
    %v1216 = vunpack.c.l.b16 %v1154
    %v1217 = vunpack.c.l.b16 %v1155
    %v1218 = vunpack.c.l.b16 %v1156
    %v1219 = vunpack.c.l.b16 %v1157
    %v1220 = vunpack.c.l.b16 %v1158
    %v1221 = vunpack.c.l.b16 %v1159
    %v1222 = vunpack.c.l.b16 %v1160
    %v1223 = vunpack.c.l.b16 %v1161
    %v1224 = vpack.c.b16 %v1209, %v1208
    %v1225 = vpack.c.b16 %v1211, %v1210
    %v1226 = vpack.c.b16 %v1213, %v1212
    %v1227 = vpack.c.b16 %v1215, %v1214
    %v1228 = vpack.c.b16 %v1217, %v1216
    %v1229 = vpack.c.b16 %v1219, %v1218
    %v1230 = vpack.c.b16 %v1221, %v1220
    %v1231 = vpack.c.b16 %v1223, %v1222
    %1240 = vmatprep.subr.bf16.mxu0 0
    %1241 = vmatpush1.bf16.msra.mxu0 %v1231
    %1242 = vmatprep.subr.bf16.mxu0 0
    %1243 = vmatpush1.bf16.msra.mxu0 %v1230
    %1244 = vmatprep.subr.bf16.mxu0 0
    %1245 = vmatpush1.bf16.msra.mxu0 %v1229
    %1246 = vmatprep.subr.bf16.mxu0 0
    %1247 = vmatpush1.bf16.msra.mxu0 %v1228
    %1248 = vmatprep.subr.bf16.mxu0 0
    %1249 = vmatpush1.bf16.msra.mxu0 %v1227
    %1250 = vmatprep.subr.bf16.mxu0 0
    %1251 = vmatpush1.bf16.msra.mxu0 %v1226
    %1252 = vmatprep.subr.bf16.mxu0 0
    %1253 = vmatpush1.bf16.msra.mxu0 %v1225
    %1254 = vmatprep.subr.bf16.mxu0 0
    %1255 = vmatpush1.bf16.msra.mxu0 %v1224
    %1256 = vmatprep.subr.bf16.mxu0 0
    %1257 = vmatpush2.bf16.msra.mxu0 0
    %1258 = vmatprep.subr.bf16.mxu0 0
    %1259 = vmatpush2.bf16.msra.mxu0 0
    %1260 = vmatprep.subr.bf16.mxu0 0
    %1261 = vmatpush2.bf16.msra.mxu0 0
    %1262 = vmatprep.subr.bf16.mxu0 0
    %1263 = vmatpush2.bf16.msra.mxu0 0
    %1264 = vmatprep.subr.bf16.mxu0 0
    %1265 = vmatpush2.bf16.msra.mxu0 0
    %1266 = vmatprep.subr.bf16.mxu0 0
    %1267 = vmatpush2.bf16.msra.mxu0 0
    %1268 = vmatprep.subr.bf16.mxu0 0
    %1269 = vmatpush2.bf16.msra.mxu0 0
    %1270 = vmatprep.subr.bf16.mxu0 0
    %1271 = vmatpush2.bf16.msra.mxu0 0
    %1272 = vmatprep.mubr.bf16.mxu0 0
    %1273 = vmatmul.mubr.bf16.gmra.mxu0 %v1186
    %v1274 = vpop.f32.mrf.mxu0
    %v1275 = vadd.f32 %v1167, %v1274
    %v1276 = vpop.f32.mrf.mxu0
    %v1277 = vpop.f32.mrf.mxu0
    %v1278 = vadd.f32 %v1167, %v1277
    %v1279 = vpop.f32.mrf.mxu0
    %1280 = vmatprep.mubr.bf16.mxu0 0
    %1281 = vmatmul.mubr.bf16.gmra.mxu0 %v1188
    %v1282 = vpop.f32.mrf.mxu0
    %v1283 = vadd.f32 %v1167, %v1282
    %v1284 = vpop.f32.mrf.mxu0
    %v1285 = vpop.f32.mrf.mxu0
    %v1286 = vadd.f32 %v1167, %v1285
    %v1287 = vpop.f32.mrf.mxu0
    %1288 = vmatprep.mubr.bf16.mxu0 0
    %1289 = vmatmul.mubr.bf16.gmra.mxu0 %v1187
    %v1290 = vpop.f32.mrf.mxu0
    %v1291 = vadd.f32 %v1167, %v1290
    %v1292 = vpop.f32.mrf.mxu0
    %v1293 = vpop.f32.mrf.mxu0
    %v1294 = vpop.f32.mrf.mxu0
    %1295 = vdwg.mxu0
    %v1296 = vadd.f32 %v1135, %v1275
    %v1297 = vadd.f32 %v1136, %v1278
    %v1298 = vadd.f32 %v1137, %v1283
    %v1299 = vadd.f32 %v1138, %v1286
    %v1300 = vadd.f32 %v1139, %v1291
    %v1301 = vmax.f32 %v1296, 0.0
    %v1302 = vmax.f32 %v1297, 0.0
    %v1303 = vmax.f32 %v1298, 0.0
    %v1304 = vmax.f32 %v1299, 0.0
    %v1305 = vmax.f32 %v1300, 0.0
    %v1306 = vpack.c.bf16 %v1302, %v1301
    %v1307 = vpack.c.bf16 %v1304, %v1303
    %v1308 = vpack.c.bf16 %v1305, %v1305
    %v1312 = vunpack.c.l.b16 %v1306
    %v1313 = vunpack.c.h.b16 %v1306
    %v1314 = vunpack.c.l.b16 %v1307
    %v1315 = vunpack.c.h.b16 %v1307
    %v1316 = vunpack.c.l.b16 %v1308
    %v1317 = vpack.c.b16 %v1312, %v1312
    %v1318 = vpack.c.b16 %v1313, %v1313
    %v1319 = vpack.c.b16 %v1314, %v1314
    %v1320 = vpack.c.b16 %v1315, %v1315
    %v1321 = vpack.c.b16 %v1316, %v1316
    %1327 = vst [vmem:[#allocation11] sm:$0xf] %v1317
    %1328 = vst [vmem:[#allocation11 + $0x4] sm:$0xf] %v1318
    %1329 = vst [vmem:[#allocation11 + $0x8] sm:$0xf] %v1319
    %1330 = vst [vmem:[#allocation11 + $0xc] sm:$0xf] %v1320
    %1331 = vst [vmem:[#allocation11 + $0x10] sm:$0xf] %v1321
    %1332 = vst [vmem:[#allocation11 + $0x14] sm:$0xf] 0
    // Predicated region
    $region50: #{tpu_custom_call.1} parent=1 // pred_check
      _
    $region51: #{tpu_custom_call.1} parent=1 // pred_check_branch
      %1334 = sbr.rel (0) target = $region53
    $region52: #{tpu_custom_call.1} parent=1 // pred_region
      %s1336 = ssub.s32 384, 384
      %1337 = vsyncadd [#allocation5], %s1336
      %s1338 = sshll.u32 [#allocation11], 4
      %s1339 = int_to_ptr.vmem [resolvable:$true] %s1338
      %1344 = dma.vmem_to_hbm [thread:$0]  %s1339, 384, %s7, [#allocation5], 64, 64, 4
    $region53: #{tpu_custom_call.1} parent=1 // pred_fallthru
      _
    // Predicated region
    $region54: #{tpu_custom_call.1} parent=1 // pred_check
      _
    $region55: #{tpu_custom_call.1} parent=1 // pred_check_branch
      %1346 = sbr.rel (0) target = $region57
    $region56: #{tpu_custom_call.1} parent=1 // pred_region
      %1347 = dma.done [#allocation5], 384
    $region57: #{tpu_custom_call.1} parent=1 // pred_fallthru
      _
    %1348 = vsyncpa [#allocation4], 1
    %1349 = vsyncpa [#allocation7], 1
    %1350 = vsyncpa [#allocation10], 1
    %1351 = vsyncpa [#allocation5], 1

// kernel: tpu_custom_call.1
$region0: #{tpu_custom_call.1}
  #allocation0 [shape = 'u32[]', space=smem, size = 0x4, offset = 0x4, fixed_abs, tag = 'smem constant byte address 0x4 - core index']
  #allocation1 [shape = 'u32[144,128]{1,0:T(1,128)}', space=vmem, size = 0x12000, scoped, tag = 'internal scratch']
  #allocation2 [shape = 'bf16[48,128]{1,0:T(8,128)(2,1)}', space=vmem, size = 0x3000, scoped, tag = 'scratch operand']
  %s0 = inlined_call_operand.hbm [shape: bf16[48,128], index: 0, kind: input, shape index: {}]
  %s1 = inlined_call_operand.hbm [shape: bf16[3,128,128], index: 1, kind: input, shape index: {}]
  %s2 = inlined_call_operand.vmem [shape: f32[1,128], index: 2, kind: input, shape index: {}]
  %s3 = inlined_call_operand.hbm [shape: bf16[3,128,128], index: 3, kind: input, shape index: {}]
  %s4 = inlined_call_operand.vmem [shape: f32[1,128], index: 4, kind: input, shape index: {}]
  %s5 = inlined_call_operand.hbm [shape: bf16[128,128], index: 5, kind: input, shape index: {}]
  %s6 = inlined_call_operand.vmem [shape: f32[1,128], index: 6, kind: input, shape index: {}]
  %s7 = inlined_call_operand.hbm [shape: bf16[48,128], index: 7, kind: output, shape index: {}]
  %s8 = sld [smem:[#allocation0]]
  $region58: #{tpu_custom_call.1} parent=0
    _
  %s10 = ssub.s32 1, %s8
  %s11 = scalar_select 0, %s10, %s8
  $region1: #{tpu_custom_call.1} parent=0
    #allocation3 [shape = 'u8[12288]{0}', space=vmem, size = 0x3000, scoped, tag = 'input window, operand 0, single buffered']
    #allocation4 [shape = 's32[1]{0}', space=sflag, size = 0x4, scoped, tag = 'scoped memory for tpu_custom_call.1']
    #allocation5 [shape = 's32[1]{0}', space=sflag, size = 0x4, scoped, tag = 'scoped memory for tpu_custom_call.1']
    #allocation6 [shape = 'u8[98304]{0}', space=vmem, size = 0x18000, scoped, tag = 'input window, operand 1, single buffered']
    #allocation7 [shape = 's32[1]{0}', space=sflag, size = 0x4, scoped, tag = 'scoped memory for tpu_custom_call.1']
    #allocation8 [shape = 'u8[98304]{0}', space=vmem, size = 0x18000, scoped, tag = 'input window, operand 3, single buffered']
    #allocation9 [shape = 'u8[32768]{0}', space=vmem, size = 0x8000, scoped, tag = 'input window, operand 5, single buffered']
    #allocation10 [shape = 's32[1]{0}', space=sflag, size = 0x4, scoped, tag = 'scoped memory for tpu_custom_call.1']
    #allocation11 [shape = 'u8[12288]{0}', space=vmem, size = 0x3000, scoped, tag = 'output window, operand 0, single buffered']
    %12 = vsyncpa [#allocation4], 0
    %13 = vsyncpa [#allocation7], 0
    %14 = vsyncpa [#allocation10], 0
    %15 = vsyncpa [#allocation5], 0
    // Predicated region
    $region2: #{tpu_custom_call.1} parent=1 // pred_check
      _
    $region3: #{tpu_custom_call.1} parent=1 // pred_check_branch
      %17 = sbr.rel (0) target = $region5
    $region4: #{tpu_custom_call.1} parent=1 // pred_region
      %s19 = ssub.s32 384, 384
      %20 = vsyncadd [#allocation4], %s19
      %s21 = sshll.u32 [#allocation3], 4
      %s22 = int_to_ptr.vmem [resolvable:$true] %s21
      %27 = dma.hbm_to_vmem [thread:$0]  %s0, 384, %s22, [#allocation4], 64, 64, 4
    $region5: #{tpu_custom_call.1} parent=1 // pred_fallthru
      _
    // Predicated region
    $region6: #{tpu_custom_call.1} parent=1 // pred_check
      _
    $region7: #{tpu_custom_call.1} parent=1 // pred_check_branch
      %29 = sbr.rel (0) target = $region9
    $region8: #{tpu_custom_call.1} parent=1 // pred_region
      %s31 = ssub.s32 3072, 3072
      %32 = vsyncadd [#allocation7], %s31
      %s33 = sshll.u32 [#allocation6], 4
      %s34 = int_to_ptr.vmem [resolvable:$true] %s33
      %39 = dma.hbm_to_vmem [thread:$0]  %s1, 3072, %s34, [#allocation7], 64, 64, 4
    $region9: #{tpu_custom_call.1} parent=1 // pred_fallthru
      _
    // Predicated region
    $region10: #{tpu_custom_call.1} parent=1 // pred_check
      _
    $region11: #{tpu_custom_call.1} parent=1 // pred_check_branch
      %41 = sbr.rel (0) target = $region13
    $region12: #{tpu_custom_call.1} parent=1 // pred_region
      _
    $region13: #{tpu_custom_call.1} parent=1 // pred_fallthru
      _
    // Predicated region
    $region14: #{tpu_custom_call.1} parent=1 // pred_check
      _
    $region15: #{tpu_custom_call.1} parent=1 // pred_check_branch
      %43 = sbr.rel (0) target = $region17
    $region16: #{tpu_custom_call.1} parent=1 // pred_region
      %s45 = ssub.s32 3072, 3072
      %46 = vsyncadd [#allocation7], %s45
      %s47 = sshll.u32 [#allocation8], 4
      %s48 = int_to_ptr.vmem [resolvable:$true] %s47
      %53 = dma.hbm_to_vmem [thread:$0]  %s3, 3072, %s48, [#allocation7], 64, 64, 4
    $region17: #{tpu_custom_call.1} parent=1 // pred_fallthru
      _
    // Predicated region
    $region18: #{tpu_custom_call.1} parent=1 // pred_check
      _
    $region19: #{tpu_custom_call.1} parent=1 // pred_check_branch
      %55 = sbr.rel (0) target = $region21
    $region20: #{tpu_custom_call.1} parent=1 // pred_region
      _
    $region21: #{tpu_custom_call.1} parent=1 // pred_fallthru
      _
    // Predicated region
    $region22: #{tpu_custom_call.1} parent=1 // pred_check
      _
    $region23: #{tpu_custom_call.1} parent=1 // pred_check_branch
      %57 = sbr.rel (0) target = $region25
    $region24: #{tpu_custom_call.1} parent=1 // pred_region
      %s59 = ssub.s32 1024, 1024
      %60 = vsyncadd [#allocation10], %s59
      %s61 = sshll.u32 [#allocation9], 4
      %s62 = int_to_ptr.vmem [resolvable:$true] %s61
      %67 = dma.hbm_to_vmem [thread:$0]  %s5, 1024, %s62, [#allocation10], 64, 64, 4
    $region25: #{tpu_custom_call.1} parent=1 // pred_fallthru
      _
    // Predicated region
    $region26: #{tpu_custom_call.1} parent=1 // pred_check
      _
    $region27: #{tpu_custom_call.1} parent=1 // pred_check_branch
      %69 = sbr.rel (0) target = $region29
    $region28: #{tpu_custom_call.1} parent=1 // pred_region
      _
    $region29: #{tpu_custom_call.1} parent=1 // pred_fallthru
      _
    // Predicated region
    $region30: #{tpu_custom_call.1} parent=1 // pred_check
      _
    $region31: #{tpu_custom_call.1} parent=1 // pred_check_branch
      %71 = sbr.rel (0) target = $region33
    $region32: #{tpu_custom_call.1} parent=1 // pred_region
      %72 = dma.done [#allocation4], 384
    $region33: #{tpu_custom_call.1} parent=1 // pred_fallthru
      _
    // Predicated region
    $region34: #{tpu_custom_call.1} parent=1 // pred_check
      _
    $region35: #{tpu_custom_call.1} parent=1 // pred_check_branch
      %74 = sbr.rel (0) target = $region37
    $region36: #{tpu_custom_call.1} parent=1 // pred_region
      %75 = dma.done [#allocation7], 3072
    $region37: #{tpu_custom_call.1} parent=1 // pred_fallthru
      _
    // Predicated region
    $region38: #{tpu_custom_call.1} parent=1 // pred_check
      _
    $region39: #{tpu_custom_call.1} parent=1 // pred_check_branch
      %77 = sbr.rel (0) target = $region41
    $region40: #{tpu_custom_call.1} parent=1 // pred_region
      %78 = dma.done [#allocation7], 3072
    $region41: #{tpu_custom_call.1} parent=1 // pred_fallthru
      _
    // Predicated region
    $region42: #{tpu_custom_call.1} parent=1 // pred_check
      _
    $region43: #{tpu_custom_call.1} parent=1 // pred_check_branch
      %80 = sbr.rel (0) target = $region45
    $region44: #{tpu_custom_call.1} parent=1 // pred_region
      %81 = dma.done [#allocation10], 1024
    $region45: #{tpu_custom_call.1} parent=1 // pred_fallthru
      _
    %v83 = vld [vmem:[#allocation3] sm:$0xf]
    %v84 = vld [vmem:[#allocation3 + $0x4] sm:$0xf]
    %v85 = vld [vmem:[#allocation3 + $0x8] sm:$0xf]
    %v86 = vld [vmem:[#allocation3 + $0xc] sm:$0xf]
    %v87 = vld [vmem:[#allocation3 + $0x10] sm:$0xf]
    %v88 = vld [vmem:[#allocation6] sm:$0xf]
    %v89 = vld [vmem:[#allocation6 + $0x4] sm:$0xf]
    %v90 = vld [vmem:[#allocation6 + $0x8] sm:$0xf]
    %v91 = vld [vmem:[#allocation6 + $0xc] sm:$0xf]
    %v92 = vld [vmem:[#allocation6 + $0x10] sm:$0xf]
    %v93 = vld [vmem:[#allocation6 + $0x14] sm:$0xf]
    %v94 = vld [vmem:[#allocation6 + $0x18] sm:$0xf]
    %v95 = vld [vmem:[#allocation6 + $0x1c] sm:$0xf]
    %v96 = vld [vmem:[#allocation6 + $0x20] sm:$0xf]
    %v97 = vld [vmem:[#allocation6 + $0x24] sm:$0xf]
    %v98 = vld [vmem:[#allocation6 + $0x28] sm:$0xf]
    %v99 = vld [vmem:[#allocation6 + $0x2c] sm:$0xf]
    %v100 = vld [vmem:[#allocation6 + $0x30] sm:$0xf]
    %v101 = vld [vmem:[#allocation6 + $0x34] sm:$0xf]
    %v102 = vld [vmem:[#allocation6 + $0x38] sm:$0xf]
    %v103 = vld [vmem:[#allocation6 + $0x3c] sm:$0xf]
    %v104 = vld [vmem:[#allocation3] sm:$0xf]
    %v105 = vld [vmem:[#allocation3 + $0x4] sm:$0xf]
    %v106 = vld [vmem:[#allocation3 + $0x8] sm:$0xf]
    %v107 = vld [vmem:[#allocation3 + $0xc] sm:$0xf]
    %v108 = vld [vmem:[#allocation3 + $0x10] sm:$0xf]
    %v109 = vld [vmem:[#allocation3 + $0x14] sm:$0x1]
    %s110 = scalar_lea.vmem [#allocation6], 64
    %v111 = vld [vmem:[%s110] sm:$0xf]
    %v112 = vld [vmem:[%s110 + $0x4] sm:$0xf]
    %v113 = vld [vmem:[%s110 + $0x8] sm:$0xf]
    %v114 = vld [vmem:[%s110 + $0xc] sm:$0xf]
    %v115 = vld [vmem:[%s110 + $0x10] sm:$0xf]
    %v116 = vld [vmem:[%s110 + $0x14] sm:$0xf]
    %v117 = vld [vmem:[%s110 + $0x18] sm:$0xf]
    %v118 = vld [vmem:[%s110 + $0x1c] sm:$0xf]
    %v119 = vld [vmem:[%s110 + $0x20] sm:$0xf]
    %v120 = vld [vmem:[%s110 + $0x24] sm:$0xf]
    %v121 = vld [vmem:[%s110 + $0x28] sm:$0xf]
    %v122 = vld [vmem:[%s110 + $0x2c] sm:$0xf]
    %v123 = vld [vmem:[%s110 + $0x30] sm:$0xf]
    %v124 = vld [vmem:[%s110 + $0x34] sm:$0xf]
    %v125 = vld [vmem:[%s110 + $0x38] sm:$0xf]
    %v126 = vld [vmem:[%s110 + $0x3c] sm:$0xf]
    %v133 = vunpack.c.l.b16 %v104
    %v134 = vunpack.c.l.b16 %v105
    %v135 = vunpack.c.l.b16 %v106
    %v136 = vunpack.c.l.b16 %v107
    %v137 = vunpack.c.l.b16 %v108
    %v138 = vunpack.c.l.b16 %v109
    %v139 = vpack.c.b16 %v134, %v133
    %v140 = vpack.c.b16 %v136, %v135
    %v141 = vpack.c.b16 %v138, %v137
    %vm142 = vsmask.f32 7424
    %v144 = vshrl.u32 %v139, 16
    %v146 = vshll.u32 %v139, 16
    %v148 = vrot.slane %v146, 1
    %v149 = vor.u32 %v144, %v148
    %v151 = vshll.u32 %v140, 16
    %v153 = vrot.slane %v151, 1
    %v154 = vsel %vm142, %v149, %v153
    %v155 = vshrl.u32 %v140, 16
    %v157 = vor.u32 %v155, %v153
    %v159 = vshll.u32 %v141, 16
    %v161 = vrot.slane %v159, 1
    %v162 = vsel %vm142, %v157, %v161
    %v163 = vshrl.u32 %v141, 16
    %v165 = vor.u32 %v163, %v161
    %v185 = vunpack.c.l.b16 %v111
    %v186 = vunpack.c.l.b16 %v112
    %v187 = vunpack.c.l.b16 %v113
    %v188 = vunpack.c.l.b16 %v114
    %v189 = vunpack.c.l.b16 %v115
    %v190 = vunpack.c.l.b16 %v116
    %v191 = vunpack.c.l.b16 %v117
    %v192 = vunpack.c.l.b16 %v118
    %v193 = vunpack.c.l.b16 %v119
    %v194 = vunpack.c.l.b16 %v120
    %v195 = vunpack.c.l.b16 %v121
    %v196 = vunpack.c.l.b16 %v122
    %v197 = vunpack.c.l.b16 %v123
    %v198 = vunpack.c.l.b16 %v124
    %v199 = vunpack.c.l.b16 %v125
    %v200 = vunpack.c.l.b16 %v126
    %v201 = vpack.c.b16 %v186, %v185
    %v202 = vpack.c.b16 %v188, %v187
    %v203 = vpack.c.b16 %v190, %v189
    %v204 = vpack.c.b16 %v192, %v191
    %v205 = vpack.c.b16 %v194, %v193
    %v206 = vpack.c.b16 %v196, %v195
    %v207 = vpack.c.b16 %v198, %v197
    %v208 = vpack.c.b16 %v200, %v199
    %217 = vmatprep.subr.bf16.mxu0 0
    %218 = vmatpush1.bf16.msra.mxu0 %v208
    %219 = vmatprep.subr.bf16.mxu0 0
    %220 = vmatpush1.bf16.msra.mxu0 %v207
    %221 = vmatprep.subr.bf16.mxu0 0
    %222 = vmatpush1.bf16.msra.mxu0 %v206
    %223 = vmatprep.subr.bf16.mxu0 0
    %224 = vmatpush1.bf16.msra.mxu0 %v205
    %225 = vmatprep.subr.bf16.mxu0 0
    %226 = vmatpush1.bf16.msra.mxu0 %v204
    %227 = vmatprep.subr.bf16.mxu0 0
    %228 = vmatpush1.bf16.msra.mxu0 %v203
    %229 = vmatprep.subr.bf16.mxu0 0
    %230 = vmatpush1.bf16.msra.mxu0 %v202
    %231 = vmatprep.subr.bf16.mxu0 0
    %232 = vmatpush1.bf16.msra.mxu0 %v201
    %233 = vmatprep.subr.bf16.mxu0 0
    %234 = vmatpush2.bf16.msra.mxu0 0
    %235 = vmatprep.subr.bf16.mxu0 0
    %236 = vmatpush2.bf16.msra.mxu0 0
    %237 = vmatprep.subr.bf16.mxu0 0
    %238 = vmatpush2.bf16.msra.mxu0 0
    %239 = vmatprep.subr.bf16.mxu0 0
    %240 = vmatpush2.bf16.msra.mxu0 0
    %241 = vmatprep.subr.bf16.mxu0 0
    %242 = vmatpush2.bf16.msra.mxu0 0
    %243 = vmatprep.subr.bf16.mxu0 0
    %244 = vmatpush2.bf16.msra.mxu0 0
    %245 = vmatprep.subr.bf16.mxu0 0
    %246 = vmatpush2.bf16.msra.mxu0 0
    %247 = vmatprep.subr.bf16.mxu0 0
    %248 = vmatpush2.bf16.msra.mxu0 0
    %249 = vmatprep.mubr.bf16.mxu0 0
    %250 = vmatmul.mubr.bf16.gmra.mxu0 %v154
    %v251 = vpop.f32.mrf.mxu0
    %v252 = vadd.f32 0.0, %v251
    %v253 = vpop.f32.mrf.mxu0
    %v254 = vpop.f32.mrf.mxu0
    %v255 = vadd.f32 0.0, %v254
    %v256 = vpop.f32.mrf.mxu0
    %257 = vmatprep.mubr.bf16.mxu0 0
    %258 = vmatmul.mubr.bf16.gmra.mxu0 %v162
    %v259 = vpop.f32.mrf.mxu0
    %v260 = vadd.f32 0.0, %v259
    %v261 = vpop.f32.mrf.mxu0
    %v262 = vpop.f32.mrf.mxu0
    %v263 = vadd.f32 0.0, %v262
    %v264 = vpop.f32.mrf.mxu0
    %265 = vmatprep.mubr.bf16.mxu0 0
    %266 = vmatmul.mubr.bf16.gmra.mxu0 %v165
    %v267 = vpop.f32.mrf.mxu0
    %v268 = vadd.f32 0.0, %v267
    %v269 = vpop.f32.mrf.mxu0
    %v270 = vpop.f32.mrf.mxu0
    %v271 = vpop.f32.mrf.mxu0
    %272 = vdwg.mxu0
    %v278 = vunpack.c.l.b16 %v83
    %v279 = vunpack.c.l.b16 %v84
    %v280 = vunpack.c.l.b16 %v85
    %v281 = vunpack.c.l.b16 %v86
    %v282 = vunpack.c.l.b16 %v87
    %v283 = vpack.c.b16 %v279, %v278
    %v284 = vpack.c.b16 %v281, %v280
    %v285 = vpack.c.b16 %v282, %v282
    %v305 = vunpack.c.l.b16 %v88
    %v306 = vunpack.c.l.b16 %v89
    %v307 = vunpack.c.l.b16 %v90
    %v308 = vunpack.c.l.b16 %v91
    %v309 = vunpack.c.l.b16 %v92
    %v310 = vunpack.c.l.b16 %v93
    %v311 = vunpack.c.l.b16 %v94
    %v312 = vunpack.c.l.b16 %v95
    %v313 = vunpack.c.l.b16 %v96
    %v314 = vunpack.c.l.b16 %v97
    %v315 = vunpack.c.l.b16 %v98
    %v316 = vunpack.c.l.b16 %v99
    %v317 = vunpack.c.l.b16 %v100
    %v318 = vunpack.c.l.b16 %v101
    %v319 = vunpack.c.l.b16 %v102
    %v320 = vunpack.c.l.b16 %v103
    %v321 = vpack.c.b16 %v306, %v305
    %v322 = vpack.c.b16 %v308, %v307
    %v323 = vpack.c.b16 %v310, %v309
    %v324 = vpack.c.b16 %v312, %v311
    %v325 = vpack.c.b16 %v314, %v313
    %v326 = vpack.c.b16 %v316, %v315
    %v327 = vpack.c.b16 %v318, %v317
    %v328 = vpack.c.b16 %v320, %v319
    %337 = vmatprep.subr.bf16.mxu0 0
    %338 = vmatpush1.bf16.msra.mxu0 %v328
    %339 = vmatprep.subr.bf16.mxu0 0
    %340 = vmatpush1.bf16.msra.mxu0 %v327
    %341 = vmatprep.subr.bf16.mxu0 0
    %342 = vmatpush1.bf16.msra.mxu0 %v326
    %343 = vmatprep.subr.bf16.mxu0 0
    %344 = vmatpush1.bf16.msra.mxu0 %v325
    %345 = vmatprep.subr.bf16.mxu0 0
    %346 = vmatpush1.bf16.msra.mxu0 %v324
    %347 = vmatprep.subr.bf16.mxu0 0
    %348 = vmatpush1.bf16.msra.mxu0 %v323
    %349 = vmatprep.subr.bf16.mxu0 0
    %350 = vmatpush1.bf16.msra.mxu0 %v322
    %351 = vmatprep.subr.bf16.mxu0 0
    %352 = vmatpush1.bf16.msra.mxu0 %v321
    %353 = vmatprep.subr.bf16.mxu0 0
    %354 = vmatpush2.bf16.msra.mxu0 0
    %355 = vmatprep.subr.bf16.mxu0 0
    %356 = vmatpush2.bf16.msra.mxu0 0
    %357 = vmatprep.subr.bf16.mxu0 0
    %358 = vmatpush2.bf16.msra.mxu0 0
    %359 = vmatprep.subr.bf16.mxu0 0
    %360 = vmatpush2.bf16.msra.mxu0 0
    %361 = vmatprep.subr.bf16.mxu0 0
    %362 = vmatpush2.bf16.msra.mxu0 0
    %363 = vmatprep.subr.bf16.mxu0 0
    %364 = vmatpush2.bf16.msra.mxu0 0
    %365 = vmatprep.subr.bf16.mxu0 0
    %366 = vmatpush2.bf16.msra.mxu0 0
    %367 = vmatprep.subr.bf16.mxu0 0
    %368 = vmatpush2.bf16.msra.mxu0 0
    %369 = vmatprep.mubr.bf16.mxu0 0
    %370 = vmatmul.mubr.bf16.gmra.mxu0 %v283
    %v371 = vpop.f32.mrf.mxu0
    %v372 = vadd.f32 %v252, %v371
    %v373 = vpop.f32.mrf.mxu0
    %v374 = vpop.f32.mrf.mxu0
    %v375 = vadd.f32 %v255, %v374
    %v376 = vpop.f32.mrf.mxu0
    %377 = vmatprep.mubr.bf16.mxu0 0
    %378 = vmatmul.mubr.bf16.gmra.mxu0 %v284
    %v379 = vpop.f32.mrf.mxu0
    %v380 = vadd.f32 %v260, %v379
    %v381 = vpop.f32.mrf.mxu0
    %v382 = vpop.f32.mrf.mxu0
    %v383 = vadd.f32 %v263, %v382
    %v384 = vpop.f32.mrf.mxu0
    %385 = vmatprep.mubr.bf16.mxu0 0
    %386 = vmatmul.mubr.bf16.gmra.mxu0 %v285
    %v387 = vpop.f32.mrf.mxu0
    %v388 = vadd.f32 %v268, %v387
    %v389 = vpop.f32.mrf.mxu0
    %v390 = vpop.f32.mrf.mxu0
    %v391 = vpop.f32.mrf.mxu0
    %392 = vdwg.mxu0
    %v393 = vld [vmem:[#allocation3] sm:$0xe]
    %s394 = scalar_lea.vmem [#allocation6], 128
    %v395 = vld [vmem:[%s394] sm:$0xf]
    %v396 = vld [vmem:[%s394 + $0x4] sm:$0xf]
    %v397 = vld [vmem:[%s394 + $0x8] sm:$0xf]
    %v398 = vld [vmem:[%s394 + $0xc] sm:$0xf]
    %v399 = vld [vmem:[%s394 + $0x10] sm:$0xf]
    %v400 = vld [vmem:[%s394 + $0x14] sm:$0xf]
    %v401 = vld [vmem:[%s394 + $0x18] sm:$0xf]
    %v402 = vld [vmem:[%s394 + $0x1c] sm:$0xf]
    %v403 = vld [vmem:[%s394 + $0x20] sm:$0xf]
    %v404 = vld [vmem:[%s394 + $0x24] sm:$0xf]
    %v405 = vld [vmem:[%s394 + $0x28] sm:$0xf]
    %v406 = vld [vmem:[%s394 + $0x2c] sm:$0xf]
    %v407 = vld [vmem:[%s394 + $0x30] sm:$0xf]
    %v408 = vld [vmem:[%s394 + $0x34] sm:$0xf]
    %v409 = vld [vmem:[%s394 + $0x38] sm:$0xf]
    %v410 = vld [vmem:[%s394 + $0x3c] sm:$0xf]
    %v412 = vunpack.c.l.b16 %v393
    %v413 = vpack.c.b16 %v134, %v412
    %vm414 = vcmask 1046528
    %v415 = vrot.slane %v413, 1
    %v416 = vrot.slane %v140, 1
    %v417 = vsel %vm414, %v415, %v416
    %v418 = vrot.slane %v141, 1
    %v419 = vsel %vm414, %v416, %v418
    %v439 = vunpack.c.l.b16 %v395
    %v440 = vunpack.c.l.b16 %v396
    %v441 = vunpack.c.l.b16 %v397
    %v442 = vunpack.c.l.b16 %v398
    %v443 = vunpack.c.l.b16 %v399
    %v444 = vunpack.c.l.b16 %v400
    %v445 = vunpack.c.l.b16 %v401
    %v446 = vunpack.c.l.b16 %v402
    %v447 = vunpack.c.l.b16 %v403
    %v448 = vunpack.c.l.b16 %v404
    %v449 = vunpack.c.l.b16 %v405
    %v450 = vunpack.c.l.b16 %v406
    %v451 = vunpack.c.l.b16 %v407
    %v452 = vunpack.c.l.b16 %v408
    %v453 = vunpack.c.l.b16 %v409
    %v454 = vunpack.c.l.b16 %v410
    %v455 = vpack.c.b16 %v440, %v439
    %v456 = vpack.c.b16 %v442, %v441
    %v457 = vpack.c.b16 %v444, %v443
    %v458 = vpack.c.b16 %v446, %v445
    %v459 = vpack.c.b16 %v448, %v447
    %v460 = vpack.c.b16 %v450, %v449
    %v461 = vpack.c.b16 %v452, %v451
    %v462 = vpack.c.b16 %v454, %v453
    %471 = vmatprep.subr.bf16.mxu0 0
    %472 = vmatpush1.bf16.msra.mxu0 %v462
    %473 = vmatprep.subr.bf16.mxu0 0
    %474 = vmatpush1.bf16.msra.mxu0 %v461
    %475 = vmatprep.subr.bf16.mxu0 0
    %476 = vmatpush1.bf16.msra.mxu0 %v460
    %477 = vmatprep.subr.bf16.mxu0 0
    %478 = vmatpush1.bf16.msra.mxu0 %v459
    %479 = vmatprep.subr.bf16.mxu0 0
    %480 = vmatpush1.bf16.msra.mxu0 %v458
    %481 = vmatprep.subr.bf16.mxu0 0
    %482 = vmatpush1.bf16.msra.mxu0 %v457
    %483 = vmatprep.subr.bf16.mxu0 0
    %484 = vmatpush1.bf16.msra.mxu0 %v456
    %485 = vmatprep.subr.bf16.mxu0 0
    %486 = vmatpush1.bf16.msra.mxu0 %v455
    %487 = vmatprep.subr.bf16.mxu0 0
    %488 = vmatpush2.bf16.msra.mxu0 0
    %489 = vmatprep.subr.bf16.mxu0 0
    %490 = vmatpush2.bf16.msra.mxu0 0
    %491 = vmatprep.subr.bf16.mxu0 0
    %492 = vmatpush2.bf16.msra.mxu0 0
    %493 = vmatprep.subr.bf16.mxu0 0
    %494 = vmatpush2.bf16.msra.mxu0 0
    %495 = vmatprep.subr.bf16.mxu0 0
    %496 = vmatpush2.bf16.msra.mxu0 0
    %497 = vmatprep.subr.bf16.mxu0 0
    %498 = vmatpush2.bf16.msra.mxu0 0
    %499 = vmatprep.subr.bf16.mxu0 0
    %500 = vmatpush2.bf16.msra.mxu0 0
    %501 = vmatprep.subr.bf16.mxu0 0
    %502 = vmatpush2.bf16.msra.mxu0 0
    %503 = vmatprep.mubr.bf16.mxu0 0
    %504 = vmatmul.mubr.bf16.gmra.mxu0 %v417
    %v505 = vpop.f32.mrf.mxu0
    %v506 = vadd.f32 0.0, %v505
    %v507 = vpop.f32.mrf.mxu0
    %v508 = vpop.f32.mrf.mxu0
    %v509 = vadd.f32 0.0, %v508
    %v510 = vpop.f32.mrf.mxu0
    %511 = vmatprep.mubr.bf16.mxu0 0
    %512 = vmatmul.mubr.bf16.gmra.mxu0 %v419
    %v513 = vpop.f32.mrf.mxu0
    %v514 = vadd.f32 0.0, %v513
    %v515 = vpop.f32.mrf.mxu0
    %v516 = vpop.f32.mrf.mxu0
    %v517 = vadd.f32 0.0, %v516
    %v518 = vpop.f32.mrf.mxu0
    %519 = vmatprep.mubr.bf16.mxu0 0
    %520 = vmatmul.mubr.bf16.gmra.mxu0 %v418
    %v521 = vpop.f32.mrf.mxu0
    %v522 = vadd.f32 0.0, %v521
    %v523 = vpop.f32.mrf.mxu0
    %v524 = vpop.f32.mrf.mxu0
    %v525 = vpop.f32.mrf.mxu0
    %526 = vdwg.mxu0
    %v527 = vadd.f32 %v372, %v506
    %v528 = vadd.f32 %v375, %v509
    %v529 = vadd.f32 %v380, %v514
    %v530 = vadd.f32 %v383, %v517
    %v531 = vadd.f32 %v388, %v522
    %v532 = vld [vmem:[%s2] sm:$0x1]
    %v534 = vlaneseq
    %v535 = vshrl.u32 %v534, 7
    %v536 = vsub.s32 0, %v535
    %v537 = vrot.slane %v532, %v536
    %v539 = vadd.f32 %v527, %v537
    %v540 = vadd.f32 %v528, %v537
    %v541 = vadd.f32 %v529, %v537
    %v542 = vadd.f32 %v530, %v537
    %v543 = vadd.f32 %v531, %v537
    %v544 = vmax.f32 %v539, 0.0
    %v545 = vmax.f32 %v540, 0.0
    %v546 = vmax.f32 %v541, 0.0
    %v547 = vmax.f32 %v542, 0.0
    %v548 = vmax.f32 %v543, 0.0
    %v549 = vlaneseq
    %v550 = vshrl.u32 %v549, 7
    %v551 = vadd.s32 %v550, 8
    %v552 = vadd.s32 %v550, 16
    %v553 = vadd.s32 %v550, 24
    %v554 = vadd.s32 %v550, 32
    %vm555 = vcmp.lt.s32.totalorder %v550, 0
    %v556 = vsub.s32 0, %v550
    %v557 = vsel %vm555, %v556, %v550
    %v558 = vmul.u32.u64.compose %v557, 2863311531
    %v559 = vextract.low.u32 %v558
    %v560 = vextract.high.u32 %v558
    %v561 = vshrl.u32 %v560, 4
    %v562 = vmul.u32 %v561, 24
    %v563 = vsub.s32 %v557, %v562
    %v564 = vsub.s32 0, %v563
    %v565 = vsel %vm555, %v564, %v563
    %vm566 = vcmp.lt.s32.totalorder %v551, 0
    %v567 = vsub.s32 0, %v551
    %v568 = vsel %vm566, %v567, %v551
    %v569 = vmul.u32.u64.compose %v568, 2863311531
    %v570 = vextract.low.u32 %v569
    %v571 = vextract.high.u32 %v569
    %v572 = vshrl.u32 %v571, 4
    %v573 = vmul.u32 %v572, 24
    %v574 = vsub.s32 %v568, %v573
    %v575 = vsub.s32 0, %v574
    %v576 = vsel %vm566, %v575, %v574
    %vm577 = vcmp.lt.s32.totalorder %v552, 0
    %v578 = vsub.s32 0, %v552
    %v579 = vsel %vm577, %v578, %v552
    %v580 = vmul.u32.u64.compose %v579, 2863311531
    %v581 = vextract.low.u32 %v580
    %v582 = vextract.high.u32 %v580
    %v583 = vshrl.u32 %v582, 4
    %v584 = vmul.u32 %v583, 24
    %v585 = vsub.s32 %v579, %v584
    %v586 = vsub.s32 0, %v585
    %v587 = vsel %vm577, %v586, %v585
    %vm588 = vcmp.lt.s32.totalorder %v553, 0
    %v589 = vsub.s32 0, %v553
    %v590 = vsel %vm588, %v589, %v553
    %v591 = vmul.u32.u64.compose %v590, 2863311531
    %v592 = vextract.low.u32 %v591
    %v593 = vextract.high.u32 %v591
    %v594 = vshrl.u32 %v593, 4
    %v595 = vmul.u32 %v594, 24
    %v596 = vsub.s32 %v590, %v595
    %v597 = vsub.s32 0, %v596
    %v598 = vsel %vm588, %v597, %v596
    %vm599 = vcmp.lt.s32.totalorder %v554, 0
    %v600 = vsub.s32 0, %v554
    %v601 = vsel %vm599, %v600, %v554
    %v602 = vmul.u32.u64.compose %v601, 2863311531
    %v603 = vextract.low.u32 %v602
    %v604 = vextract.high.u32 %v602
    %v605 = vshrl.u32 %v604, 4
    %v606 = vmul.u32 %v605, 24
    %v607 = vsub.s32 %v601, %v606
    %v608 = vsub.s32 0, %v607
    %v609 = vsel %vm599, %v608, %v607
    %vm610 = vcmp.ne.s32.totalorder %v565, 0
    %vm611 = vcmp.ne.s32.totalorder %v576, 0
    %vm612 = vcmp.ne.s32.totalorder %v587, 0
    %vm613 = vcmp.ne.s32.totalorder %v598, 0
    %vm614 = vcmp.ne.s32.totalorder %v609, 0
    %vm615 = vcmp.lt.s32.totalorder %v565, 0
    %vm616 = vcmp.lt.s32.totalorder %v576, 0
    %vm617 = vcmp.lt.s32.totalorder %v587, 0
    %vm618 = vcmp.lt.s32.totalorder %v598, 0
    %vm619 = vcmp.lt.s32.totalorder %v609, 0
    %vm620 = vmand %vm615, %vm610
    %vm621 = vmand %vm616, %vm611
    %vm622 = vmand %vm617, %vm612
    %vm623 = vmand %vm618, %vm613
    %vm624 = vmand %vm619, %vm614
    %v625 = vadd.s32 %v565, 24
    %v626 = vadd.s32 %v576, 24
    %v627 = vadd.s32 %v587, 24
    %v628 = vadd.s32 %v598, 24
    %v629 = vadd.s32 %v609, 24
    %v630 = vsel %vm620, %v625, %v565
    %v631 = vsel %vm621, %v626, %v576
    %v632 = vsel %vm622, %v627, %v587
    %v633 = vsel %vm623, %v628, %v598
    %v634 = vsel %vm624, %v629, %v609
    %vm635 = vcmp.lt.s32.totalorder %v630, 16
    %vm636 = vcmp.lt.s32.totalorder %v631, 16
    %vm637 = vcmp.lt.s32.totalorder %v632, 16
    %vm638 = vcmp.lt.s32.totalorder %v633, 16
    %vm639 = vcmp.lt.s32.totalorder %v634, 16
    %v640 = vsel %vm635, 1, 0
    %v641 = vsel %vm636, 1, 0
    %v642 = vsel %vm637, 1, 0
    %v643 = vsel %vm638, 1, 0
    %v644 = vsel %vm639, 1, 0
    %vm645 = vcmp.eq.s32.totalorder %v640, 1
    %vm646 = vcmp.eq.s32.totalorder %v641, 1
    %vm647 = vcmp.eq.s32.totalorder %v642, 1
    %vm648 = vcmp.eq.s32.totalorder %v643, 1
    %vm649 = vcmp.eq.s32.totalorder %v644, 1
    %v650 = vsel %vm645, %v544, 0.0
    %v651 = vsel %vm646, %v545, 0.0
    %v652 = vsel %vm647, %v546, 0.0
    %v653 = vsel %vm648, %v547, 0.0
    %v654 = vsel %vm649, %v548, 0.0
    %v655 = vpack.c.bf16 %v651, %v650
    %v656 = vpack.c.bf16 %v653, %v652
    %v657 = vpack.c.bf16 %v654, %v654
    %p658 = scmp.eq.s32.totalorder 0, 0
    // Predicated region
    $region46: #{tpu_custom_call.1} parent=1 // pred_check
      %p659 = pneg %p658
    $region47: #{tpu_custom_call.1} parent=1 // pred_check_branch
      %661 = sbr.rel (%p659) target = $region49
    $region48: #{tpu_custom_call.1} parent=1 // pred_region
      %662 = vst [vmem:[#allocation2] sm:$0xf] 0
    $region49: #{tpu_custom_call.1} parent=1 // pred_fallthru
      _
    %v666 = vunpack.c.l.b16 %v655
    %v667 = vunpack.c.h.b16 %v655
    %v668 = vunpack.c.l.b16 %v656
    %v669 = vunpack.c.h.b16 %v656
    %v670 = vunpack.c.l.b16 %v657
    %v671 = vpack.c.b16 %v666, %v666
    %v672 = vpack.c.b16 %v667, %v667
    %v673 = vpack.c.b16 %v668, %v668
    %v674 = vpack.c.b16 %v669, %v669
    %v675 = vpack.c.b16 %v670, %v670
    %681 = vst [vmem:[#allocation2 + $0x4] sm:$0xf] %v671
    %682 = vst [vmem:[#allocation2 + $0x8] sm:$0xf] %v672
    %683 = vst [vmem:[#allocation2 + $0xc] sm:$0xf] %v673
    %684 = vst [vmem:[#allocation2 + $0x10] sm:$0xf] %v674
    %685 = vst [vmem:[#allocation2 + $0x14] sm:$0xf] %v675
    %v686 = vld [vmem:[#allocation2] sm:$0x8]
    %v687 = vld [vmem:[#allocation2 + $0x4] sm:$0xf]
    %v688 = vld [vmem:[#allocation2 + $0x8] sm:$0xf]
    %v689 = vld [vmem:[#allocation2 + $0xc] sm:$0xf]
    %v690 = vld [vmem:[#allocation2 + $0x10] sm:$0xf]
    %v691 = vld [vmem:[#allocation2 + $0x14] sm:$0x7]
    %v692 = vld [vmem:[#allocation8] sm:$0xf]
    %v693 = vld [vmem:[#allocation8 + $0x4] sm:$0xf]
    %v694 = vld [vmem:[#allocation8 + $0x8] sm:$0xf]
    %v695 = vld [vmem:[#allocation8 + $0xc] sm:$0xf]
    %v696 = vld [vmem:[#allocation8 + $0x10] sm:$0xf]
    %v697 = vld [vmem:[#allocation8 + $0x14] sm:$0xf]
    %v698 = vld [vmem:[#allocation8 + $0x18] sm:$0xf]
    %v699 = vld [vmem:[#allocation8 + $0x1c] sm:$0xf]
    %v700 = vld [vmem:[#allocation8 + $0x20] sm:$0xf]
    %v701 = vld [vmem:[#allocation8 + $0x24] sm:$0xf]
    %v702 = vld [vmem:[#allocation8 + $0x28] sm:$0xf]
    %v703 = vld [vmem:[#allocation8 + $0x2c] sm:$0xf]
    %v704 = vld [vmem:[#allocation8 + $0x30] sm:$0xf]
    %v705 = vld [vmem:[#allocation8 + $0x34] sm:$0xf]
    %v706 = vld [vmem:[#allocation8 + $0x38] sm:$0xf]
    %v707 = vld [vmem:[#allocation8 + $0x3c] sm:$0xf]
    %v708 = vld [vmem:[#allocation2 + $0x14] sm:$0xf]
    %s709 = scalar_lea.vmem [#allocation8], 64
    %v710 = vld [vmem:[%s709] sm:$0xf]
    %v711 = vld [vmem:[%s709 + $0x4] sm:$0xf]
    %v712 = vld [vmem:[%s709 + $0x8] sm:$0xf]
    %v713 = vld [vmem:[%s709 + $0xc] sm:$0xf]
    %v714 = vld [vmem:[%s709 + $0x10] sm:$0xf]
    %v715 = vld [vmem:[%s709 + $0x14] sm:$0xf]
    %v716 = vld [vmem:[%s709 + $0x18] sm:$0xf]
    %v717 = vld [vmem:[%s709 + $0x1c] sm:$0xf]
    %v718 = vld [vmem:[%s709 + $0x20] sm:$0xf]
    %v719 = vld [vmem:[%s709 + $0x24] sm:$0xf]
    %v720 = vld [vmem:[%s709 + $0x28] sm:$0xf]
    %v721 = vld [vmem:[%s709 + $0x2c] sm:$0xf]
    %v722 = vld [vmem:[%s709 + $0x30] sm:$0xf]
    %v723 = vld [vmem:[%s709 + $0x34] sm:$0xf]
    %v724 = vld [vmem:[%s709 + $0x38] sm:$0xf]
    %v725 = vld [vmem:[%s709 + $0x3c] sm:$0xf]
    %v732 = vunpack.c.l.b16 %v686
    %v733 = vunpack.c.l.b16 %v687
    %v734 = vunpack.c.l.b16 %v688
    %v735 = vunpack.c.l.b16 %v689
    %v736 = vunpack.c.l.b16 %v690
    %v737 = vunpack.c.l.b16 %v708
    %v738 = vpack.c.b16 %v733, %v732
    %v739 = vpack.c.b16 %v735, %v734
    %v740 = vpack.c.b16 %v737, %v736
    %vm741 = vsmask.f32 4352
    %v743 = vshrl.u32 %v738, 16
    %v745 = vrot.slane %v743, 3
    %v746 = vshll.u32 %v738, 16
    %v748 = vrot.slane %v746, 4
    %v749 = vor.u32 %v745, %v748
    %v751 = vshrl.u32 %v739, 16
    %v753 = vrot.slane %v751, 3
    %v754 = vshll.u32 %v739, 16
    %v756 = vrot.slane %v754, 4
    %v757 = vor.u32 %v753, %v756
    %v758 = vsel %vm741, %v749, %v757
    %v760 = vshrl.u32 %v740, 16
    %v762 = vrot.slane %v760, 3
    %v763 = vshll.u32 %v740, 16
    %v765 = vrot.slane %v763, 4
    %v766 = vor.u32 %v762, %v765
    %v767 = vsel %vm741, %v757, %v766
    %v787 = vunpack.c.l.b16 %v710
    %v788 = vunpack.c.l.b16 %v711
    %v789 = vunpack.c.l.b16 %v712
    %v790 = vunpack.c.l.b16 %v713
    %v791 = vunpack.c.l.b16 %v714
    %v792 = vunpack.c.l.b16 %v715
    %v793 = vunpack.c.l.b16 %v716
    %v794 = vunpack.c.l.b16 %v717
    %v795 = vunpack.c.l.b16 %v718
    %v796 = vunpack.c.l.b16 %v719
    %v797 = vunpack.c.l.b16 %v720
    %v798 = vunpack.c.l.b16 %v721
    %v799 = vunpack.c.l.b16 %v722
    %v800 = vunpack.c.l.b16 %v723
    %v801 = vunpack.c.l.b16 %v724
    %v802 = vunpack.c.l.b16 %v725
    %v803 = vpack.c.b16 %v788, %v787
    %v804 = vpack.c.b16 %v790, %v789
    %v805 = vpack.c.b16 %v792, %v791
    %v806 = vpack.c.b16 %v794, %v793
    %v807 = vpack.c.b16 %v796, %v795
    %v808 = vpack.c.b16 %v798, %v797
    %v809 = vpack.c.b16 %v800, %v799
    %v810 = vpack.c.b16 %v802, %v801
    %819 = vmatprep.subr.bf16.mxu0 0
    %820 = vmatpush1.bf16.msra.mxu0 %v810
    %821 = vmatprep.subr.bf16.mxu0 0
    %822 = vmatpush1.bf16.msra.mxu0 %v809
    %823 = vmatprep.subr.bf16.mxu0 0
    %824 = vmatpush1.bf16.msra.mxu0 %v808
    %825 = vmatprep.subr.bf16.mxu0 0
    %826 = vmatpush1.bf16.msra.mxu0 %v807
    %827 = vmatprep.subr.bf16.mxu0 0
    %828 = vmatpush1.bf16.msra.mxu0 %v806
    %829 = vmatprep.subr.bf16.mxu0 0
    %830 = vmatpush1.bf16.msra.mxu0 %v805
    %831 = vmatprep.subr.bf16.mxu0 0
    %832 = vmatpush1.bf16.msra.mxu0 %v804
    %833 = vmatprep.subr.bf16.mxu0 0
    %834 = vmatpush1.bf16.msra.mxu0 %v803
    %835 = vmatprep.subr.bf16.mxu0 0
    %836 = vmatpush2.bf16.msra.mxu0 0
    %837 = vmatprep.subr.bf16.mxu0 0
    %838 = vmatpush2.bf16.msra.mxu0 0
    %839 = vmatprep.subr.bf16.mxu0 0
    %840 = vmatpush2.bf16.msra.mxu0 0
    %841 = vmatprep.subr.bf16.mxu0 0
    %842 = vmatpush2.bf16.msra.mxu0 0
    %843 = vmatprep.subr.bf16.mxu0 0
    %844 = vmatpush2.bf16.msra.mxu0 0
    %845 = vmatprep.subr.bf16.mxu0 0
    %846 = vmatpush2.bf16.msra.mxu0 0
    %847 = vmatprep.subr.bf16.mxu0 0
    %848 = vmatpush2.bf16.msra.mxu0 0
    %849 = vmatprep.subr.bf16.mxu0 0
    %850 = vmatpush2.bf16.msra.mxu0 0
    %851 = vmatprep.mubr.bf16.mxu0 0
    %852 = vmatmul.mubr.bf16.gmra.mxu0 %v758
    %v853 = vpop.f32.mrf.mxu0
    %v854 = vadd.f32 0.0, %v853
    %v855 = vpop.f32.mrf.mxu0
    %v856 = vpop.f32.mrf.mxu0
    %v857 = vadd.f32 0.0, %v856
    %v858 = vpop.f32.mrf.mxu0
    %859 = vmatprep.mubr.bf16.mxu0 0
    %860 = vmatmul.mubr.bf16.gmra.mxu0 %v767
    %v861 = vpop.f32.mrf.mxu0
    %v862 = vadd.f32 0.0, %v861
    %v863 = vpop.f32.mrf.mxu0
    %v864 = vpop.f32.mrf.mxu0
    %v865 = vadd.f32 0.0, %v864
    %v866 = vpop.f32.mrf.mxu0
    %867 = vmatprep.mubr.bf16.mxu0 0
    %868 = vmatmul.mubr.bf16.gmra.mxu0 %v766
    %v869 = vpop.f32.mrf.mxu0
    %v870 = vadd.f32 0.0, %v869
    %v871 = vpop.f32.mrf.mxu0
    %v872 = vpop.f32.mrf.mxu0
    %v873 = vpop.f32.mrf.mxu0
    %874 = vdwg.mxu0
    %v876 = vunpack.c.l.b16 %v691
    %v877 = vpack.c.b16 %v876, %v736
    %vm878 = vcmask 1044480
    %v879 = vrot.slane %v738, 3
    %v880 = vrot.slane %v739, 3
    %v881 = vsel %vm878, %v879, %v880
    %v882 = vrot.slane %v877, 3
    %v883 = vsel %vm878, %v880, %v882
    %v903 = vunpack.c.l.b16 %v692
    %v904 = vunpack.c.l.b16 %v693
    %v905 = vunpack.c.l.b16 %v694
    %v906 = vunpack.c.l.b16 %v695
    %v907 = vunpack.c.l.b16 %v696
    %v908 = vunpack.c.l.b16 %v697
    %v909 = vunpack.c.l.b16 %v698
    %v910 = vunpack.c.l.b16 %v699
    %v911 = vunpack.c.l.b16 %v700
    %v912 = vunpack.c.l.b16 %v701
    %v913 = vunpack.c.l.b16 %v702
    %v914 = vunpack.c.l.b16 %v703
    %v915 = vunpack.c.l.b16 %v704
    %v916 = vunpack.c.l.b16 %v705
    %v917 = vunpack.c.l.b16 %v706
    %v918 = vunpack.c.l.b16 %v707
    %v919 = vpack.c.b16 %v904, %v903
    %v920 = vpack.c.b16 %v906, %v905
    %v921 = vpack.c.b16 %v908, %v907
    %v922 = vpack.c.b16 %v910, %v909
    %v923 = vpack.c.b16 %v912, %v911
    %v924 = vpack.c.b16 %v914, %v913
    %v925 = vpack.c.b16 %v916, %v915
    %v926 = vpack.c.b16 %v918, %v917
    %935 = vmatprep.subr.bf16.mxu0 0
    %936 = vmatpush1.bf16.msra.mxu0 %v926
    %937 = vmatprep.subr.bf16.mxu0 0
    %938 = vmatpush1.bf16.msra.mxu0 %v925
    %939 = vmatprep.subr.bf16.mxu0 0
    %940 = vmatpush1.bf16.msra.mxu0 %v924
    %941 = vmatprep.subr.bf16.mxu0 0
    %942 = vmatpush1.bf16.msra.mxu0 %v923
    %943 = vmatprep.subr.bf16.mxu0 0
    %944 = vmatpush1.bf16.msra.mxu0 %v922
    %945 = vmatprep.subr.bf16.mxu0 0
    %946 = vmatpush1.bf16.msra.mxu0 %v921
    %947 = vmatprep.subr.bf16.mxu0 0
    %948 = vmatpush1.bf16.msra.mxu0 %v920
    %949 = vmatprep.subr.bf16.mxu0 0
    %950 = vmatpush1.bf16.msra.mxu0 %v919
    %951 = vmatprep.subr.bf16.mxu0 0
    %952 = vmatpush2.bf16.msra.mxu0 0
    %953 = vmatprep.subr.bf16.mxu0 0
    %954 = vmatpush2.bf16.msra.mxu0 0
    %955 = vmatprep.subr.bf16.mxu0 0
    %956 = vmatpush2.bf16.msra.mxu0 0
    %957 = vmatprep.subr.bf16.mxu0 0
    %958 = vmatpush2.bf16.msra.mxu0 0
    %959 = vmatprep.subr.bf16.mxu0 0
    %960 = vmatpush2.bf16.msra.mxu0 0
    %961 = vmatprep.subr.bf16.mxu0 0
    %962 = vmatpush2.bf16.msra.mxu0 0
    %963 = vmatprep.subr.bf16.mxu0 0
    %964 = vmatpush2.bf16.msra.mxu0 0
    %965 = vmatprep.subr.bf16.mxu0 0
    %966 = vmatpush2.bf16.msra.mxu0 0
    %967 = vmatprep.mubr.bf16.mxu0 0
    %968 = vmatmul.mubr.bf16.gmra.mxu0 %v881
    %v969 = vpop.f32.mrf.mxu0
    %v970 = vadd.f32 %v854, %v969
    %v971 = vpop.f32.mrf.mxu0
    %v972 = vpop.f32.mrf.mxu0
    %v973 = vadd.f32 %v857, %v972
    %v974 = vpop.f32.mrf.mxu0
    %975 = vmatprep.mubr.bf16.mxu0 0
    %976 = vmatmul.mubr.bf16.gmra.mxu0 %v883
    %v977 = vpop.f32.mrf.mxu0
    %v978 = vadd.f32 %v862, %v977
    %v979 = vpop.f32.mrf.mxu0
    %v980 = vpop.f32.mrf.mxu0
    %v981 = vadd.f32 %v865, %v980
    %v982 = vpop.f32.mrf.mxu0
    %983 = vmatprep.mubr.bf16.mxu0 0
    %984 = vmatmul.mubr.bf16.gmra.mxu0 %v882
    %v985 = vpop.f32.mrf.mxu0
    %v986 = vadd.f32 %v870, %v985
    %v987 = vpop.f32.mrf.mxu0
    %v988 = vpop.f32.mrf.mxu0
    %v989 = vpop.f32.mrf.mxu0
    %990 = vdwg.mxu0
    %s991 = scalar_lea.vmem [#allocation8], 128
    %v992 = vld [vmem:[%s991] sm:$0xf]
    %v993 = vld [vmem:[%s991 + $0x4] sm:$0xf]
    %v994 = vld [vmem:[%s991 + $0x8] sm:$0xf]
    %v995 = vld [vmem:[%s991 + $0xc] sm:$0xf]
    %v996 = vld [vmem:[%s991 + $0x10] sm:$0xf]
    %v997 = vld [vmem:[%s991 + $0x14] sm:$0xf]
    %v998 = vld [vmem:[%s991 + $0x18] sm:$0xf]
    %v999 = vld [vmem:[%s991 + $0x1c] sm:$0xf]
    %v1000 = vld [vmem:[%s991 + $0x20] sm:$0xf]
    %v1001 = vld [vmem:[%s991 + $0x24] sm:$0xf]
    %v1002 = vld [vmem:[%s991 + $0x28] sm:$0xf]
    %v1003 = vld [vmem:[%s991 + $0x2c] sm:$0xf]
    %v1004 = vld [vmem:[%s991 + $0x30] sm:$0xf]
    %v1005 = vld [vmem:[%s991 + $0x34] sm:$0xf]
    %v1006 = vld [vmem:[%s991 + $0x38] sm:$0xf]
    %v1007 = vld [vmem:[%s991 + $0x3c] sm:$0xf]
    %v1008 = vpack.c.b16 %v734, %v733
    %v1009 = vpack.c.b16 %v736, %v735
    %v1010 = vpack.c.b16 %v737, %v737
    %v1030 = vunpack.c.l.b16 %v992
    %v1031 = vunpack.c.l.b16 %v993
    %v1032 = vunpack.c.l.b16 %v994
    %v1033 = vunpack.c.l.b16 %v995
    %v1034 = vunpack.c.l.b16 %v996
    %v1035 = vunpack.c.l.b16 %v997
    %v1036 = vunpack.c.l.b16 %v998
    %v1037 = vunpack.c.l.b16 %v999
    %v1038 = vunpack.c.l.b16 %v1000
    %v1039 = vunpack.c.l.b16 %v1001
    %v1040 = vunpack.c.l.b16 %v1002
    %v1041 = vunpack.c.l.b16 %v1003
    %v1042 = vunpack.c.l.b16 %v1004
    %v1043 = vunpack.c.l.b16 %v1005
    %v1044 = vunpack.c.l.b16 %v1006
    %v1045 = vunpack.c.l.b16 %v1007
    %v1046 = vpack.c.b16 %v1031, %v1030
    %v1047 = vpack.c.b16 %v1033, %v1032
    %v1048 = vpack.c.b16 %v1035, %v1034
    %v1049 = vpack.c.b16 %v1037, %v1036
    %v1050 = vpack.c.b16 %v1039, %v1038
    %v1051 = vpack.c.b16 %v1041, %v1040
    %v1052 = vpack.c.b16 %v1043, %v1042
    %v1053 = vpack.c.b16 %v1045, %v1044
    %1062 = vmatprep.subr.bf16.mxu0 0
    %1063 = vmatpush1.bf16.msra.mxu0 %v1053
    %1064 = vmatprep.subr.bf16.mxu0 0
    %1065 = vmatpush1.bf16.msra.mxu0 %v1052
    %1066 = vmatprep.subr.bf16.mxu0 0
    %1067 = vmatpush1.bf16.msra.mxu0 %v1051
    %1068 = vmatprep.subr.bf16.mxu0 0
    %1069 = vmatpush1.bf16.msra.mxu0 %v1050
    %1070 = vmatprep.subr.bf16.mxu0 0
    %1071 = vmatpush1.bf16.msra.mxu0 %v1049
    %1072 = vmatprep.subr.bf16.mxu0 0
    %1073 = vmatpush1.bf16.msra.mxu0 %v1048
    %1074 = vmatprep.subr.bf16.mxu0 0
    %1075 = vmatpush1.bf16.msra.mxu0 %v1047
    %1076 = vmatprep.subr.bf16.mxu0 0
    %1077 = vmatpush1.bf16.msra.mxu0 %v1046
    %1078 = vmatprep.subr.bf16.mxu0 0
    %1079 = vmatpush2.bf16.msra.mxu0 0
    %1080 = vmatprep.subr.bf16.mxu0 0
    %1081 = vmatpush2.bf16.msra.mxu0 0
    %1082 = vmatprep.subr.bf16.mxu0 0
    %1083 = vmatpush2.bf16.msra.mxu0 0
    %1084 = vmatprep.subr.bf16.mxu0 0
    %1085 = vmatpush2.bf16.msra.mxu0 0
    %1086 = vmatprep.subr.bf16.mxu0 0
    %1087 = vmatpush2.bf16.msra.mxu0 0
    %1088 = vmatprep.subr.bf16.mxu0 0
    %1089 = vmatpush2.bf16.msra.mxu0 0
    %1090 = vmatprep.subr.bf16.mxu0 0
    %1091 = vmatpush2.bf16.msra.mxu0 0
    %1092 = vmatprep.subr.bf16.mxu0 0
    %1093 = vmatpush2.bf16.msra.mxu0 0
    %1094 = vmatprep.mubr.bf16.mxu0 0
    %1095 = vmatmul.mubr.bf16.gmra.mxu0 %v1008
    %v1096 = vpop.f32.mrf.mxu0
    %v1097 = vadd.f32 0.0, %v1096
    %v1098 = vpop.f32.mrf.mxu0
    %v1099 = vpop.f32.mrf.mxu0
    %v1100 = vadd.f32 0.0, %v1099
    %v1101 = vpop.f32.mrf.mxu0
    %1102 = vmatprep.mubr.bf16.mxu0 0
    %1103 = vmatmul.mubr.bf16.gmra.mxu0 %v1009
    %v1104 = vpop.f32.mrf.mxu0
    %v1105 = vadd.f32 0.0, %v1104
    %v1106 = vpop.f32.mrf.mxu0
    %v1107 = vpop.f32.mrf.mxu0
    %v1108 = vadd.f32 0.0, %v1107
    %v1109 = vpop.f32.mrf.mxu0
    %1110 = vmatprep.mubr.bf16.mxu0 0
    %1111 = vmatmul.mubr.bf16.gmra.mxu0 %v1010
    %v1112 = vpop.f32.mrf.mxu0
    %v1113 = vadd.f32 0.0, %v1112
    %v1114 = vpop.f32.mrf.mxu0
    %v1115 = vpop.f32.mrf.mxu0
    %v1116 = vpop.f32.mrf.mxu0
    %1117 = vdwg.mxu0
    %v1118 = vadd.f32 %v970, %v1097
    %v1119 = vadd.f32 %v973, %v1100
    %v1120 = vadd.f32 %v978, %v1105
    %v1121 = vadd.f32 %v981, %v1108
    %v1122 = vadd.f32 %v986, %v1113
    %v1123 = vld [vmem:[%s4] sm:$0x1]
    %v1125 = vlaneseq
    %v1126 = vshrl.u32 %v1125, 7
    %v1127 = vsub.s32 0, %v1126
    %v1128 = vrot.slane %v1123, %v1127
    %v1130 = vadd.f32 %v1118, %v1128
    %v1131 = vadd.f32 %v1119, %v1128
    %v1132 = vadd.f32 %v1120, %v1128
    %v1133 = vadd.f32 %v1121, %v1128
    %v1134 = vadd.f32 %v1122, %v1128
    %v1135 = vmax.f32 %v1130, 0.0
    %v1136 = vmax.f32 %v1131, 0.0
    %v1137 = vmax.f32 %v1132, 0.0
    %v1138 = vmax.f32 %v1133, 0.0
    %v1139 = vmax.f32 %v1134, 0.0
    %v1140 = vld [vmem:[#allocation3] sm:$0xe]
    %v1141 = vld [vmem:[#allocation3 + $0x4] sm:$0xf]
    %v1142 = vld [vmem:[#allocation3 + $0x8] sm:$0xf]
    %v1143 = vld [vmem:[#allocation3 + $0xc] sm:$0xf]
    %v1144 = vld [vmem:[#allocation3 + $0x10] sm:$0xf]
    %v1145 = vld [vmem:[#allocation3 + $0x14] sm:$0x1]
    %v1146 = vld [vmem:[#allocation9] sm:$0xf]
    %v1147 = vld [vmem:[#allocation9 + $0x4] sm:$0xf]
    %v1148 = vld [vmem:[#allocation9 + $0x8] sm:$0xf]
    %v1149 = vld [vmem:[#allocation9 + $0xc] sm:$0xf]
    %v1150 = vld [vmem:[#allocation9 + $0x10] sm:$0xf]
    %v1151 = vld [vmem:[#allocation9 + $0x14] sm:$0xf]
    %v1152 = vld [vmem:[#allocation9 + $0x18] sm:$0xf]
    %v1153 = vld [vmem:[#allocation9 + $0x1c] sm:$0xf]
    %v1154 = vld [vmem:[#allocation9 + $0x20] sm:$0xf]
    %v1155 = vld [vmem:[#allocation9 + $0x24] sm:$0xf]
    %v1156 = vld [vmem:[#allocation9 + $0x28] sm:$0xf]
    %v1157 = vld [vmem:[#allocation9 + $0x2c] sm:$0xf]
    %v1158 = vld [vmem:[#allocation9 + $0x30] sm:$0xf]
    %v1159 = vld [vmem:[#allocation9 + $0x34] sm:$0xf]
    %v1160 = vld [vmem:[#allocation9 + $0x38] sm:$0xf]
    %v1161 = vld [vmem:[#allocation9 + $0x3c] sm:$0xf]
    %v1162 = vld [vmem:[%s6] sm:$0x1]
    %v1164 = vlaneseq
    %v1165 = vshrl.u32 %v1164, 7
    %v1166 = vsub.s32 0, %v1165
    %v1167 = vrot.slane %v1162, %v1166
    %v1175 = vunpack.c.l.b16 %v1140
    %v1176 = vunpack.c.l.b16 %v1141
    %v1177 = vunpack.c.l.b16 %v1142
    %v1178 = vunpack.c.l.b16 %v1143
    %v1179 = vunpack.c.l.b16 %v1144
    %v1180 = vunpack.c.l.b16 %v1145
    %v1181 = vpack.c.b16 %v1176, %v1175
    %v1182 = vpack.c.b16 %v1178, %v1177
    %v1183 = vpack.c.b16 %v1180, %v1179
    %v1184 = vrot.slane %v1181, 1
    %v1185 = vrot.slane %v1182, 1
    %v1186 = vsel %vm414, %v1184, %v1185
    %v1187 = vrot.slane %v1183, 1
    %v1188 = vsel %vm414, %v1185, %v1187
    %v1208 = vunpack.c.l.b16 %v1146
    %v1209 = vunpack.c.l.b16 %v1147
    %v1210 = vunpack.c.l.b16 %v1148
    %v1211 = vunpack.c.l.b16 %v1149
    %v1212 = vunpack.c.l.b16 %v1150
    %v1213 = vunpack.c.l.b16 %v1151
    %v1214 = vunpack.c.l.b16 %v1152
    %v1215 = vunpack.c.l.b16 %v1153
    %v1216 = vunpack.c.l.b16 %v1154
    %v1217 = vunpack.c.l.b16 %v1155
    %v1218 = vunpack.c.l.b16 %v1156
    %v1219 = vunpack.c.l.b16 %v1157
    %v1220 = vunpack.c.l.b16 %v1158
    %v1221 = vunpack.c.l.b16 %v1159
    %v1222 = vunpack.c.l.b16 %v1160
    %v1223 = vunpack.c.l.b16 %v1161
    %v1224 = vpack.c.b16 %v1209, %v1208
    %v1225 = vpack.c.b16 %v1211, %v1210
    %v1226 = vpack.c.b16 %v1213, %v1212
    %v1227 = vpack.c.b16 %v1215, %v1214
    %v1228 = vpack.c.b16 %v1217, %v1216
    %v1229 = vpack.c.b16 %v1219, %v1218
    %v1230 = vpack.c.b16 %v1221, %v1220
    %v1231 = vpack.c.b16 %v1223, %v1222
    %1240 = vmatprep.subr.bf16.mxu0 0
    %1241 = vmatpush1.bf16.msra.mxu0 %v1231
    %1242 = vmatprep.subr.bf16.mxu0 0
    %1243 = vmatpush1.bf16.msra.mxu0 %v1230
    %1244 = vmatprep.subr.bf16.mxu0 0
    %1245 = vmatpush1.bf16.msra.mxu0 %v1229
    %1246 = vmatprep.subr.bf16.mxu0 0
    %1247 = vmatpush1.bf16.msra.mxu0 %v1228
    %1248 = vmatprep.subr.bf16.mxu0 0
    %1249 = vmatpush1.bf16.msra.mxu0 %v1227
    %1250 = vmatprep.subr.bf16.mxu0 0
    %1251 = vmatpush1.bf16.msra.mxu0 %v1226
    %1252 = vmatprep.subr.bf16.mxu0 0
    %1253 = vmatpush1.bf16.msra.mxu0 %v1225
    %1254 = vmatprep.subr.bf16.mxu0 0
    %1255 = vmatpush1.bf16.msra.mxu0 %v1224
    %1256 = vmatprep.subr.bf16.mxu0 0
    %1257 = vmatpush2.bf16.msra.mxu0 0
    %1258 = vmatprep.subr.bf16.mxu0 0
    %1259 = vmatpush2.bf16.msra.mxu0 0
    %1260 = vmatprep.subr.bf16.mxu0 0
    %1261 = vmatpush2.bf16.msra.mxu0 0
    %1262 = vmatprep.subr.bf16.mxu0 0
    %1263 = vmatpush2.bf16.msra.mxu0 0
    %1264 = vmatprep.subr.bf16.mxu0 0
    %1265 = vmatpush2.bf16.msra.mxu0 0
    %1266 = vmatprep.subr.bf16.mxu0 0
    %1267 = vmatpush2.bf16.msra.mxu0 0
    %1268 = vmatprep.subr.bf16.mxu0 0
    %1269 = vmatpush2.bf16.msra.mxu0 0
    %1270 = vmatprep.subr.bf16.mxu0 0
    %1271 = vmatpush2.bf16.msra.mxu0 0
    %1272 = vmatprep.mubr.bf16.mxu0 0
    %1273 = vmatmul.mubr.bf16.gmra.mxu0 %v1186
    %v1274 = vpop.f32.mrf.mxu0
    %v1275 = vadd.f32 %v1167, %v1274
    %v1276 = vpop.f32.mrf.mxu0
    %v1277 = vpop.f32.mrf.mxu0
    %v1278 = vadd.f32 %v1167, %v1277
    %v1279 = vpop.f32.mrf.mxu0
    %1280 = vmatprep.mubr.bf16.mxu0 0
    %1281 = vmatmul.mubr.bf16.gmra.mxu0 %v1188
    %v1282 = vpop.f32.mrf.mxu0
    %v1283 = vadd.f32 %v1167, %v1282
    %v1284 = vpop.f32.mrf.mxu0
    %v1285 = vpop.f32.mrf.mxu0
    %v1286 = vadd.f32 %v1167, %v1285
    %v1287 = vpop.f32.mrf.mxu0
    %1288 = vmatprep.mubr.bf16.mxu0 0
    %1289 = vmatmul.mubr.bf16.gmra.mxu0 %v1187
    %v1290 = vpop.f32.mrf.mxu0
    %v1291 = vadd.f32 %v1167, %v1290
    %v1292 = vpop.f32.mrf.mxu0
    %v1293 = vpop.f32.mrf.mxu0
    %v1294 = vpop.f32.mrf.mxu0
    %1295 = vdwg.mxu0
    %v1296 = vadd.f32 %v1135, %v1275
    %v1297 = vadd.f32 %v1136, %v1278
    %v1298 = vadd.f32 %v1137, %v1283
    %v1299 = vadd.f32 %v1138, %v1286
    %v1300 = vadd.f32 %v1139, %v1291
    %v1301 = vmax.f32 %v1296, 0.0
    %v1302 = vmax.f32 %v1297, 0.0
    %v1303 = vmax.f32 %v1298, 0.0
    %v1304 = vmax.f32 %v1299, 0.0
    %v1305 = vmax.f32 %v1300, 0.0
    %v1306 = vpack.c.bf16 %v1302, %v1301
    %v1307 = vpack.c.bf16 %v1304, %v1303
    %v1308 = vpack.c.bf16 %v1305, %v1305
    %v1312 = vunpack.c.l.b16 %v1306
    %v1313 = vunpack.c.h.b16 %v1306
    %v1314 = vunpack.c.l.b16 %v1307
    %v1315 = vunpack.c.h.b16 %v1307
    %v1316 = vunpack.c.l.b16 %v1308
    %v1317 = vpack.c.b16 %v1312, %v1312
    %v1318 = vpack.c.b16 %v1313, %v1313
    %v1319 = vpack.c.b16 %v1314, %v1314
    %v1320 = vpack.c.b16 %v1315, %v1315
    %v1321 = vpack.c.b16 %v1316, %v1316
    %1327 = vst [vmem:[#allocation11] sm:$0xf] %v1317
    %1328 = vst [vmem:[#allocation11 + $0x4] sm:$0xf] %v1318
    %1329 = vst [vmem:[#allocation11 + $0x8] sm:$0xf] %v1319
    %1330 = vst [vmem:[#allocation11 + $0xc] sm:$0xf] %v1320
    %1331 = vst [vmem:[#allocation11 + $0x10] sm:$0xf] %v1321
    %1332 = vst [vmem:[#allocation11 + $0x14] sm:$0xf] 0
    // Predicated region
    $region50: #{tpu_custom_call.1} parent=1 // pred_check
      _
    $region51: #{tpu_custom_call.1} parent=1 // pred_check_branch
      %1334 = sbr.rel (0) target = $region53
    $region52: #{tpu_custom_call.1} parent=1 // pred_region
      %s1336 = ssub.s32 384, 384
      %1337 = vsyncadd [#allocation5], %s1336
      %s1338 = sshll.u32 [#allocation11], 4
      %s1339 = int_to_ptr.vmem [resolvable:$true] %s1338
      %1344 = dma.vmem_to_hbm [thread:$0]  %s1339, 384, %s7, [#allocation5], 64, 64, 4
    $region53: #{tpu_custom_call.1} parent=1 // pred_fallthru
      _
    // Predicated region
    $region54: #{tpu_custom_call.1} parent=1 // pred_check
      _
    $region55: #{tpu_custom_call.1} parent=1 // pred_check_branch
      %1346 = sbr.rel (0) target = $region57
    $region56: #{tpu_custom_call.1} parent=1 // pred_region
      %1347 = dma.done [#allocation5], 384
    $region57: #{tpu_custom_call.1} parent=1 // pred_fallthru
      _
    %1348 = vsyncpa [#allocation4], 1
    %1349 = vsyncpa [#allocation7], 1
    %1350 = vsyncpa [#allocation10], 1
    %1351 = vsyncpa [#allocation5], 1

</llo_original>
